<compile_context>
chip_gen: v5e
topology: v5e:2x2
jax: 0.10.0
libtpu: 0.0.40
codegen_flags: <defaults>
</compile_context>

<pallas_src>
import functools

import numpy as np
import jax
import jax.numpy as jnp
from jax.experimental import pallas as pl
from jax.experimental.pallas import tpu as pltpu

BN_EPS = 1e-5


# ----------------------------------------------------------------------------
# Fully fused kernel: one (batch, N-tile) grid point computes the whole
# descriptor for N_TILE faces.  All activations are (C, N_TILE).
# ----------------------------------------------------------------------------
def _fused_kernel(x_ref,
                  wr1_ref, br1_ref, wr2_ref, br2_ref,
                  wf1_ref, bf1_ref, wf2_ref, bf2_ref,
                  wk_ref, ks_ref, kb_ref,
                  ws1f_ref, ws1k_ref, ws1x_ref, bs1_ref,
                  ws2_ref, bs2_ref,
                  o_ref, *, sigma):
    x = x_ref[0]                                   # (21, NT): [corners9 | normals3 | nbr9]
    nt = x.shape[1]
    K = ks_ref.shape[0]

    def mm(w_ref, a):
        return jnp.dot(w_ref[...], a, preferred_element_type=jnp.float32)

    # --- FaceRotateConvolution: three rotated views folded into stacked /
    # block-diagonal weights; the 1/3 view average is folded into wf1.
    h = jnp.maximum(mm(wr1_ref, x) + br1_ref[...], 0.0)      # (96, NT) = [h1;h2;h3]
    r = jnp.maximum(mm(wr2_ref, h) + br2_ref[...], 0.0)      # (96, NT) = [r1;r2;r3]
    h1 = jnp.maximum(mm(wf1_ref, r) + bf1_ref[...], 0.0)     # (64, NT)
    f1 = jnp.maximum(mm(wf2_ref, h1) + bf2_ref[...], 0.0)    # (64, NT)

    # --- FaceKernelCorrelation: pure VPU/EUP, direct squared-distance form.
    # Face point i (0=center normal, 1..3=neighbor normals), coordinate c lives
    # in row (9+c) resp. (12 + 3*c + (i-1)) of x.  Kernel point (c, j) is lane
    # column (4*c + j) of the (K, 12) table wk_ref.
    inv = -1.0 / (2.0 * sigma * sigma)
    acc = jnp.zeros((K, nt), jnp.float32)
    for i in range(4):
        rows = [(9 + c) if i == 0 else (12 + 3 * c + (i - 1)) for c in range(3)]
        p_b = [jnp.broadcast_to(x[r0:r0 + 1, :], (K, nt)) for r0 in rows]
        for j in range(4):
            d = jnp.zeros((K, nt), jnp.float32)
            for c in range(3):
                wcj = wk_ref[:, 4 * c + j:4 * c + j + 1]      # (K, 1)
                diff = p_b[c] - wcj
                d = d + diff * diff
            acc = acc + jnp.exp(d * inv)
    # BN scale has the 1/16 folded in.
    f2 = jnp.maximum(acc * ks_ref[...] + kb_ref[...], 0.0)    # (K, NT)

    # --- structural MLP: concat([fea1, fea2, normals]) folded into three
    # partial matmuls (ws1x only has nonzero columns at the normal rows 9:12).
    s1 = mm(ws1f_ref, f1) + mm(ws1k_ref, f2) + mm(ws1x_ref, x) + bs1_ref[...]
    s1 = jnp.maximum(s1, 0.0)                                 # (131, NT)
    y = jnp.maximum(mm(ws2_ref, s1) + bs2_ref[...], 0.0)      # (131, NT)
    o_ref[0] = y.astype(o_ref.dtype)                          # lane-dense store


# ----------------------------------------------------------------------------
# Parameter construction (deterministic, synthetic).  Returns both the raw
# per-layer parameters (for the pure-JAX reference) and the fused/folded
# parameters consumed by the kernel.
# ----------------------------------------------------------------------------
def init_params(key, num_kernel):
    K = num_kernel
    keys = iter(jax.random.split(key, 40))
    inv_std = 1.0 / np.sqrt(1.0 + BN_EPS)          # running_var = 1, running_mean = 0

    def conv_bn(cin, cout):
        w = 0.1 * jax.random.normal(next(keys), (cout, cin), jnp.float32)
        b = 0.1 * jax.random.normal(next(keys), (cout,), jnp.float32)
        gamma = 1.0 + 0.1 * jax.random.normal(next(keys), (cout,), jnp.float32)
        beta = 0.1 * jax.random.normal(next(keys), (cout,), jnp.float32)
        s = gamma * inv_std
        return w * s[:, None], b * s + beta        # BN folded: (cout, cin), (cout,)

    r1w, r1b = conv_bn(6, 32)
    r2w, r2b = conv_bn(32, 32)
    f1w, f1b = conv_bn(32, 64)
    f2w, f2b = conv_bn(64, 64)
    s1w, s1b = conv_bn(64 + 3 + K, 131)
    s2w, s2b = conv_bn(131, 131)

    # FaceKernelCorrelation kernel points (alpha/beta spherical params).
    alpha = jax.random.uniform(next(keys), (1, K, 4), jnp.float32) * np.pi
    beta = jax.random.uniform(next(keys), (1, K, 4), jnp.float32) * 2.0 * np.pi
    kw = jnp.concatenate([jnp.sin(alpha) * jnp.cos(beta),
                          jnp.sin(alpha) * jnp.sin(beta),
                          jnp.cos(alpha)], axis=0)            # (3, K, 4): [c, k, j]
    g = 1.0 + 0.1 * jax.random.normal(next(keys), (K,), jnp.float32)
    kbeta = 0.1 * jax.random.normal(next(keys), (K,), jnp.float32)

    raw = dict(r1w=r1w, r1b=r1b, r2w=r2w, r2b=r2b, f1w=f1w, f1b=f1b, f2w=f2w, f2b=f2b,
               s1w=s1w, s1b=s1b, s2w=s2w, s2b=s2b,
               kw=kw, k_scale=g * inv_std, k_shift=kbeta)

    # --- fused weights for the kernel ---
    # rotate layer 1: three views stacked on output rows; reads corner rows 0:9 of x.
    wr1 = jnp.zeros((96, 21), jnp.float32)
    wr1 = wr1.at[0:32, 0:6].set(r1w)               # view 1: corners[0:6]
    wr1 = wr1.at[32:64, 3:9].set(r1w)              # view 2: corners[3:9]
    wr1 = wr1.at[64:96, 6:9].set(r1w[:, 0:3])      # view 3: [corners[6:9], corners[0:3]]
    wr1 = wr1.at[64:96, 0:3].set(r1w[:, 3:6])
    br1 = jnp.tile(r1b, 3)[:, None]
    # rotate layer 2: block-diagonal over the three views.
    wr2 = jnp.zeros((96, 96), jnp.float32)
    for v in range(3):
        wr2 = wr2.at[32 * v:32 * (v + 1), 32 * v:32 * (v + 1)].set(r2w)
    br2 = jnp.tile(r2b, 3)[:, None]
    # fusion layer 1: 1/3 view average folded in.
    wf1 = jnp.concatenate([f1w] * 3, axis=1) / 3.0            # (64, 96)
    bf1 = f1b[:, None]
    wf2 = f2w
    bf2 = f2b[:, None]
    # FKC kernel points as a (K, 12) lane table, column = 4*c + j.
    wk = jnp.transpose(kw, (1, 0, 2)).reshape(K, 12)
    ks = (raw["k_scale"] / 16.0)[:, None]          # BN scale with the 1/16 folded in
    kb = raw["k_shift"][:, None]
    # structural layer 1: split over [fea1 | fea2 | normals] inputs.
    ws1f = s1w[:, 0:64]
    ws1k = s1w[:, 64:64 + K]
    ws1x = jnp.zeros((131, 21), jnp.float32).at[:, 9:12].set(s1w[:, 64 + K:67 + K])
    bs1 = s1b[:, None]
    ws2 = s2w
    bs2 = s2b[:, None]

    fused = dict(wr1=wr1, br1=br1, wr2=wr2, br2=br2, wf1=wf1, bf1=bf1, wf2=wf2, bf2=bf2,
                 wk=wk, ks=ks, kb=kb, ws1f=ws1f, ws1k=ws1k, ws1x=ws1x, bs1=bs1,
                 ws2=ws2, bs2=bs2)
    return raw, fused


def _round_up(x, m):
    return ((x + m - 1) // m) * m


def _weight_spec(w):
    nd = w.ndim
    return pl.BlockSpec(tuple(w.shape), lambda b, t: (0,) * nd)


# ----------------------------------------------------------------------------
# Public forward.  Inputs match the PyTorch module: corners (B, 9, N),
# normals (B, 3, N), neighbor_index (B, N, 3).  Output (B, 131, N).
# ----------------------------------------------------------------------------
def structural_descriptor(params, corners, normals, neighbor_index, *, sigma):
    B, _, N = corners.shape

    # Gather neighbor normals channels-first and pack everything into one
    # (B, 21, N) tensor: [corners(9) | normals(3) | neighbor normals(9, ch=c*3+j)].
    idx_t = jnp.transpose(neighbor_index, (0, 2, 1))               # (B, 3, N): [b, j, n]
    nbr = jax.vmap(lambda nm, it: nm[:, it])(normals, idx_t)       # (B, 3, 3, N): [b, c, j, n]
    x = jnp.concatenate([corners, normals, nbr.reshape(B, 9, N)], axis=1)  # (B, 21, N)

    # N tiling: pick the lane-dense tile (multiple of 128, <= 512) that wastes
    # the least padding, preferring larger tiles on ties.
    candidates = (128, 256, 384, 512)
    nt = min(candidates, key=lambda t: (_round_up(N, t), -t))
    Np = _round_up(N, nt)
    if Np != N:
        x = jnp.pad(x, ((0, 0), (0, 0), (0, Np - N)))

    names = ("wr1", "br1", "wr2", "br2", "wf1", "bf1", "wf2", "bf2",
             "wk", "ks", "kb", "ws1f", "ws1k", "ws1x", "bs1", "ws2", "bs2")
    warrs = [params[n] for n in names]

    kern = functools.partial(_fused_kernel, sigma=sigma)
    out = pl.pallas_call(
        kern,
        out_shape=jax.ShapeDtypeStruct((B, 131, Np), jnp.float32),
        grid=(B, Np // nt),
        in_specs=[pl.BlockSpec((1, 21, nt), lambda b, t: (b, 0, t))]
        + [_weight_spec(w) for w in warrs],
        out_specs=pl.BlockSpec((1, 131, nt), lambda b, t: (b, 0, t)),
        compiler_params=pltpu.CompilerParams(
            dimension_semantics=("parallel", "parallel")),
    )(x, *warrs)
    return out[:, :, :N]


# ----------------------------------------------------------------------------
# Pure-JAX reference (unfused, straight transcription of the PyTorch module
# with BN folded in eval mode) — used to validate the weight folding.
# ----------------------------------------------------------------------------
def reference_forward(raw, corners, normals, neighbor_index, *, sigma):
    hi = jax.lax.Precision.HIGHEST

    def mlp(x, w1, b1, w2, b2):
        h = jnp.einsum("oi,bin->bon", w1, x, precision=hi) + b1[None, :, None]
        h = jnp.maximum(h, 0.0)
        y = jnp.einsum("oi,bin->bon", w2, h, precision=hi) + b2[None, :, None]
        return jnp.maximum(y, 0.0)

    def rot(x):
        return mlp(x, raw["r1w"], raw["r1b"], raw["r2w"], raw["r2b"])

    c = corners
    fea = (rot(c[:, 0:6]) + rot(c[:, 3:9])
           + rot(jnp.concatenate([c[:, 6:9], c[:, 0:3]], axis=1))) / 3.0
    fea1 = mlp(fea, raw["f1w"], raw["f1b"], raw["f2w"], raw["f2b"])        # (B, 64, N)

    idx_t = jnp.transpose(neighbor_index, (0, 2, 1))                       # (B, 3, N)
    nbr = jax.vmap(lambda nm, it: nm[:, it])(normals, idx_t)               # (B, 3, 3, N)
    pts = jnp.concatenate([normals[:, :, None, :], nbr], axis=2)           # (B, 3, 4, N)
    w = raw["kw"]                                                          # (3, K, 4)
    diff = pts[:, :, None, :, :, None] - w[None, :, :, None, None, :]      # (B,3,K,4,N,4)
    dist = jnp.sum(diff * diff, axis=1)                                    # (B,K,4,N,4)
    fea_raw = jnp.sum(jnp.exp(dist * (-1.0 / (2.0 * sigma ** 2))), axis=(2, 4)) / 16.0
    fea2 = jnp.maximum(fea_raw * raw["k_scale"][None, :, None]
                       + raw["k_shift"][None, :, None], 0.0)               # (B, K, N)

    xcat = jnp.concatenate([fea1, fea2, normals], axis=1)
    return mlp(xcat, raw["s1w"], raw["s1b"], raw["s2w"], raw["s2b"])       # (B, 131, N)


if __name__ == "__main__":
    B, N, K = 2, 16, 8
    sigma = 0.2

    key = jax.random.PRNGKey(0)
    k1, k2, k3, kp = jax.random.split(key, 4)
    corners = jax.random.normal(k1, (B, 9, N), jnp.float32)
    normals = jax.random.normal(k2, (B, 3, N), jnp.float32)
    normals = normals / jnp.linalg.norm(normals, axis=1, keepdims=True)
    neighbor_index = jax.random.randint(k3, (B, N, 3), 0, N)

    raw, fused = init_params(kp, K)
    out = structural_descriptor(fused, corners, normals, neighbor_index, sigma=sigma)
    jax.block_until_ready(out)
    assert out.shape == (B, 131, N), out.shape
    assert bool(jnp.all(jnp.isfinite(out)))

    ref = reference_forward(raw, corners, normals, neighbor_index, sigma=sigma)
    np.testing.assert_allclose(np.asarray(out), np.asarray(ref), rtol=1e-2, atol=1e-2)
    print("KERNEL_OK")
</pallas_src>

<mosaic_0001>
module attributes {stable_mosaic.version = 11 : i64} {
  func.func @_fused_kernel(%arg0: i32, %arg1: i32, %arg2: memref<1x21x128xf32, #tpu.memory_space<vmem>>, %arg3: memref<96x21xf32, #tpu.memory_space<vmem>>, %arg4: memref<96x1xf32, #tpu.memory_space<vmem>>, %arg5: memref<96x96xf32, #tpu.memory_space<vmem>>, %arg6: memref<96x1xf32, #tpu.memory_space<vmem>>, %arg7: memref<64x96xf32, #tpu.memory_space<vmem>>, %arg8: memref<64x1xf32, #tpu.memory_space<vmem>>, %arg9: memref<64x64xf32, #tpu.memory_space<vmem>>, %arg10: memref<64x1xf32, #tpu.memory_space<vmem>>, %arg11: memref<8x12xf32, #tpu.memory_space<vmem>>, %arg12: memref<8x1xf32, #tpu.memory_space<vmem>>, %arg13: memref<8x1xf32, #tpu.memory_space<vmem>>, %arg14: memref<131x64xf32, #tpu.memory_space<vmem>>, %arg15: memref<131x8xf32, #tpu.memory_space<vmem>>, %arg16: memref<131x21xf32, #tpu.memory_space<vmem>>, %arg17: memref<131x1xf32, #tpu.memory_space<vmem>>, %arg18: memref<131x131xf32, #tpu.memory_space<vmem>>, %arg19: memref<131x1xf32, #tpu.memory_space<vmem>>, %arg20: memref<1x131x128xf32, #tpu.memory_space<vmem>>) attributes {dimension_semantics = [#tpu.dimension_semantics<parallel>, #tpu.dimension_semantics<parallel>], iteration_bounds = array<i64: 2, 1>, scalar_prefetch = 0 : i64, scratch_operands = 0 : i64, tpu.core_type = #tpu.core_type<tc>, window_params = [{transform_indices = @transform_0, window_bounds = array<i64: 1, 21, 128>}, {pipeline_mode = #tpu.pipeline_mode<synchronous>, transform_indices = @transform_1, window_bounds = array<i64: 96, 21>}, {pipeline_mode = #tpu.pipeline_mode<synchronous>, transform_indices = @transform_2, window_bounds = array<i64: 96, 1>}, {pipeline_mode = #tpu.pipeline_mode<synchronous>, transform_indices = @transform_3, window_bounds = array<i64: 96, 96>}, {pipeline_mode = #tpu.pipeline_mode<synchronous>, transform_indices = @transform_4, window_bounds = array<i64: 96, 1>}, {pipeline_mode = #tpu.pipeline_mode<synchronous>, transform_indices = @transform_5, window_bounds = array<i64: 64, 96>}, {pipeline_mode = #tpu.pipeline_mode<synchronous>, transform_indices = @transform_6, window_bounds = array<i64: 64, 1>}, {pipeline_mode = #tpu.pipeline_mode<synchronous>, transform_indices = @transform_7, window_bounds = array<i64: 64, 64>}, {pipeline_mode = #tpu.pipeline_mode<synchronous>, transform_indices = @transform_8, window_bounds = array<i64: 64, 1>}, {pipeline_mode = #tpu.pipeline_mode<synchronous>, transform_indices = @transform_9, window_bounds = array<i64: 8, 12>}, {pipeline_mode = #tpu.pipeline_mode<synchronous>, transform_indices = @transform_10, window_bounds = array<i64: 8, 1>}, {pipeline_mode = #tpu.pipeline_mode<synchronous>, transform_indices = @transform_11, window_bounds = array<i64: 8, 1>}, {pipeline_mode = #tpu.pipeline_mode<synchronous>, transform_indices = @transform_12, window_bounds = array<i64: 131, 64>}, {pipeline_mode = #tpu.pipeline_mode<synchronous>, transform_indices = @transform_13, window_bounds = array<i64: 131, 8>}, {pipeline_mode = #tpu.pipeline_mode<synchronous>, transform_indices = @transform_14, window_bounds = array<i64: 131, 21>}, {pipeline_mode = #tpu.pipeline_mode<synchronous>, transform_indices = @transform_15, window_bounds = array<i64: 131, 1>}, {pipeline_mode = #tpu.pipeline_mode<synchronous>, transform_indices = @transform_16, window_bounds = array<i64: 131, 131>}, {pipeline_mode = #tpu.pipeline_mode<synchronous>, transform_indices = @transform_17, window_bounds = array<i64: 131, 1>}, {transform_indices = @transform_18, window_bounds = array<i64: 1, 131, 128>}]} {
    %c0 = arith.constant 0 : index
    %c0_0 = arith.constant 0 : index
    %c0_1 = arith.constant 0 : index
    %0 = vector.load %arg2[%c0, %c0_0, %c0_1] : memref<1x21x128xf32, #tpu.memory_space<vmem>>, vector<1x21x128xf32>
    %1 = vector.shape_cast %0 : vector<1x21x128xf32> to vector<21x128xf32>
    %c0_2 = arith.constant 0 : index
    %c0_3 = arith.constant 0 : index
    %2 = vector.load %arg3[%c0_2, %c0_3] : memref<96x21xf32, #tpu.memory_space<vmem>>, vector<96x21xf32>
    %cst = arith.constant dense<0.000000e+00> : vector<96x128xf32>
    %3 = tpu.matmul %2, %1, %cst {dimension_numbers = #tpu.dot_dimension_numbers<[1], [0], [0], [1], [0, 0, 1, 1], [], []>} : vector<96x21xf32>, vector<21x128xf32>, vector<96x128xf32> -> vector<96x128xf32>
    %c0_4 = arith.constant 0 : index
    %c0_5 = arith.constant 0 : index
    %4 = vector.load %arg4[%c0_4, %c0_5] : memref<96x1xf32, #tpu.memory_space<vmem>>, vector<96x1xf32>
    %5 = vector.broadcast %4 : vector<96x1xf32> to vector<96x128xf32>
    %6 = arith.addf %3, %5 : vector<96x128xf32>
    %cst_6 = arith.constant 0.000000e+00 : f32
    %7 = vector.broadcast %cst_6 : f32 to vector<96x128xf32>
    %8 = arith.maximumf %6, %7 : vector<96x128xf32>
    %c0_7 = arith.constant 0 : index
    %c0_8 = arith.constant 0 : index
    %9 = vector.load %arg5[%c0_7, %c0_8] : memref<96x96xf32, #tpu.memory_space<vmem>>, vector<96x96xf32>
    %cst_9 = arith.constant dense<0.000000e+00> : vector<96x128xf32>
    %10 = tpu.matmul %9, %8, %cst_9 {dimension_numbers = #tpu.dot_dimension_numbers<[1], [0], [0], [1], [0, 0, 1, 1], [], []>} : vector<96x96xf32>, vector<96x128xf32>, vector<96x128xf32> -> vector<96x128xf32>
    %c0_10 = arith.constant 0 : index
    %c0_11 = arith.constant 0 : index
    %11 = vector.load %arg6[%c0_10, %c0_11] : memref<96x1xf32, #tpu.memory_space<vmem>>, vector<96x1xf32>
    %12 = vector.broadcast %11 : vector<96x1xf32> to vector<96x128xf32>
    %13 = arith.addf %10, %12 : vector<96x128xf32>
    %cst_12 = arith.constant 0.000000e+00 : f32
    %14 = vector.broadcast %cst_12 : f32 to vector<96x128xf32>
    %15 = arith.maximumf %13, %14 : vector<96x128xf32>
    %c0_13 = arith.constant 0 : index
    %c0_14 = arith.constant 0 : index
    %16 = vector.load %arg7[%c0_13, %c0_14] : memref<64x96xf32, #tpu.memory_space<vmem>>, vector<64x96xf32>
    %cst_15 = arith.constant dense<0.000000e+00> : vector<64x128xf32>
    %17 = tpu.matmul %16, %15, %cst_15 {dimension_numbers = #tpu.dot_dimension_numbers<[1], [0], [0], [1], [0, 0, 1, 1], [], []>} : vector<64x96xf32>, vector<96x128xf32>, vector<64x128xf32> -> vector<64x128xf32>
    %c0_16 = arith.constant 0 : index
    %c0_17 = arith.constant 0 : index
    %18 = vector.load %arg8[%c0_16, %c0_17] : memref<64x1xf32, #tpu.memory_space<vmem>>, vector<64x1xf32>
    %19 = vector.broadcast %18 : vector<64x1xf32> to vector<64x128xf32>
    %20 = arith.addf %17, %19 : vector<64x128xf32>
    %cst_18 = arith.constant 0.000000e+00 : f32
    %21 = vector.broadcast %cst_18 : f32 to vector<64x128xf32>
    %22 = arith.maximumf %20, %21 : vector<64x128xf32>
    %c0_19 = arith.constant 0 : index
    %c0_20 = arith.constant 0 : index
    %23 = vector.load %arg9[%c0_19, %c0_20] : memref<64x64xf32, #tpu.memory_space<vmem>>, vector<64x64xf32>
    %cst_21 = arith.constant dense<0.000000e+00> : vector<64x128xf32>
    %24 = tpu.matmul %23, %22, %cst_21 {dimension_numbers = #tpu.dot_dimension_numbers<[1], [0], [0], [1], [0, 0, 1, 1], [], []>} : vector<64x64xf32>, vector<64x128xf32>, vector<64x128xf32> -> vector<64x128xf32>
    %c0_22 = arith.constant 0 : index
    %c0_23 = arith.constant 0 : index
    %25 = vector.load %arg10[%c0_22, %c0_23] : memref<64x1xf32, #tpu.memory_space<vmem>>, vector<64x1xf32>
    %26 = vector.broadcast %25 : vector<64x1xf32> to vector<64x128xf32>
    %27 = arith.addf %24, %26 : vector<64x128xf32>
    %cst_24 = arith.constant 0.000000e+00 : f32
    %28 = vector.broadcast %cst_24 : f32 to vector<64x128xf32>
    %29 = arith.maximumf %27, %28 : vector<64x128xf32>
    %cst_25 = arith.constant 0.000000e+00 : f32
    %30 = vector.broadcast %cst_25 : f32 to vector<8x128xf32>
    %31 = vector.extract_strided_slice %1 {offsets = [9, 0], sizes = [1, 128], strides = [1, 1]} : vector<21x128xf32> to vector<1x128xf32>
    %32 = vector.shape_cast %31 : vector<1x128xf32> to vector<1x128xf32>
    %33 = vector.broadcast %32 : vector<1x128xf32> to vector<8x128xf32>
    %34 = vector.extract_strided_slice %1 {offsets = [10, 0], sizes = [1, 128], strides = [1, 1]} : vector<21x128xf32> to vector<1x128xf32>
    %35 = vector.shape_cast %34 : vector<1x128xf32> to vector<1x128xf32>
    %36 = vector.broadcast %35 : vector<1x128xf32> to vector<8x128xf32>
    %37 = vector.extract_strided_slice %1 {offsets = [11, 0], sizes = [1, 128], strides = [1, 1]} : vector<21x128xf32> to vector<1x128xf32>
    %38 = vector.shape_cast %37 : vector<1x128xf32> to vector<1x128xf32>
    %39 = vector.broadcast %38 : vector<1x128xf32> to vector<8x128xf32>
    %cst_26 = arith.constant 0.000000e+00 : f32
    %40 = vector.broadcast %cst_26 : f32 to vector<8x128xf32>
    %c0_27 = arith.constant 0 : index
    %c0_28 = arith.constant 0 : index
    %41 = vector.load %arg11[%c0_27, %c0_28] : memref<8x12xf32, #tpu.memory_space<vmem>>, vector<8x1xf32>
    %42 = vector.broadcast %41 : vector<8x1xf32> to vector<8x128xf32>
    %43 = arith.subf %33, %42 : vector<8x128xf32>
    %44 = arith.mulf %43, %43 : vector<8x128xf32>
    %45 = arith.addf %40, %44 : vector<8x128xf32>
    %c0_29 = arith.constant 0 : index
    %c4 = arith.constant 4 : index
    %46 = vector.load %arg11[%c0_29, %c4] : memref<8x12xf32, #tpu.memory_space<vmem>>, vector<8x1xf32>
    %47 = vector.broadcast %46 : vector<8x1xf32> to vector<8x128xf32>
    %48 = arith.subf %36, %47 : vector<8x128xf32>
    %49 = arith.mulf %48, %48 : vector<8x128xf32>
    %50 = arith.addf %45, %49 : vector<8x128xf32>
    %c0_30 = arith.constant 0 : index
    %c8 = arith.constant 8 : index
    %51 = vector.load %arg11[%c0_30, %c8] : memref<8x12xf32, #tpu.memory_space<vmem>>, vector<8x1xf32>
    %52 = vector.broadcast %51 : vector<8x1xf32> to vector<8x128xf32>
    %53 = arith.subf %39, %52 : vector<8x128xf32>
    %54 = arith.mulf %53, %53 : vector<8x128xf32>
    %55 = arith.addf %50, %54 : vector<8x128xf32>
    %cst_31 = arith.constant -1.250000e+01 : f32
    %56 = vector.broadcast %cst_31 : f32 to vector<8x128xf32>
    %57 = arith.mulf %55, %56 : vector<8x128xf32>
    %58 = math.exp %57 : vector<8x128xf32>
    %59 = arith.addf %30, %58 : vector<8x128xf32>
    %cst_32 = arith.constant 0.000000e+00 : f32
    %60 = vector.broadcast %cst_32 : f32 to vector<8x128xf32>
    %c0_33 = arith.constant 0 : index
    %c1 = arith.constant 1 : index
    %61 = vector.load %arg11[%c0_33, %c1] : memref<8x12xf32, #tpu.memory_space<vmem>>, vector<8x1xf32>
    %62 = vector.broadcast %61 : vector<8x1xf32> to vector<8x128xf32>
    %63 = arith.subf %33, %62 : vector<8x128xf32>
    %64 = arith.mulf %63, %63 : vector<8x128xf32>
    %65 = arith.addf %60, %64 : vector<8x128xf32>
    %c0_34 = arith.constant 0 : index
    %c5 = arith.constant 5 : index
    %66 = vector.load %arg11[%c0_34, %c5] : memref<8x12xf32, #tpu.memory_space<vmem>>, vector<8x1xf32>
    %67 = vector.broadcast %66 : vector<8x1xf32> to vector<8x128xf32>
    %68 = arith.subf %36, %67 : vector<8x128xf32>
    %69 = arith.mulf %68, %68 : vector<8x128xf32>
    %70 = arith.addf %65, %69 : vector<8x128xf32>
    %c0_35 = arith.constant 0 : index
    %c9 = arith.constant 9 : index
    %71 = vector.load %arg11[%c0_35, %c9] : memref<8x12xf32, #tpu.memory_space<vmem>>, vector<8x1xf32>
    %72 = vector.broadcast %71 : vector<8x1xf32> to vector<8x128xf32>
    %73 = arith.subf %39, %72 : vector<8x128xf32>
    %74 = arith.mulf %73, %73 : vector<8x128xf32>
    %75 = arith.addf %70, %74 : vector<8x128xf32>
    %cst_36 = arith.constant -1.250000e+01 : f32
    %76 = vector.broadcast %cst_36 : f32 to vector<8x128xf32>
    %77 = arith.mulf %75, %76 : vector<8x128xf32>
    %78 = math.exp %77 : vector<8x128xf32>
    %79 = arith.addf %59, %78 : vector<8x128xf32>
    %cst_37 = arith.constant 0.000000e+00 : f32
    %80 = vector.broadcast %cst_37 : f32 to vector<8x128xf32>
    %c0_38 = arith.constant 0 : index
    %c2 = arith.constant 2 : index
    %81 = vector.load %arg11[%c0_38, %c2] : memref<8x12xf32, #tpu.memory_space<vmem>>, vector<8x1xf32>
    %82 = vector.broadcast %81 : vector<8x1xf32> to vector<8x128xf32>
    %83 = arith.subf %33, %82 : vector<8x128xf32>
    %84 = arith.mulf %83, %83 : vector<8x128xf32>
    %85 = arith.addf %80, %84 : vector<8x128xf32>
    %c0_39 = arith.constant 0 : index
    %c6 = arith.constant 6 : index
    %86 = vector.load %arg11[%c0_39, %c6] : memref<8x12xf32, #tpu.memory_space<vmem>>, vector<8x1xf32>
    %87 = vector.broadcast %86 : vector<8x1xf32> to vector<8x128xf32>
    %88 = arith.subf %36, %87 : vector<8x128xf32>
    %89 = arith.mulf %88, %88 : vector<8x128xf32>
    %90 = arith.addf %85, %89 : vector<8x128xf32>
    %c0_40 = arith.constant 0 : index
    %c10 = arith.constant 10 : index
    %91 = vector.load %arg11[%c0_40, %c10] : memref<8x12xf32, #tpu.memory_space<vmem>>, vector<8x1xf32>
    %92 = vector.broadcast %91 : vector<8x1xf32> to vector<8x128xf32>
    %93 = arith.subf %39, %92 : vector<8x128xf32>
    %94 = arith.mulf %93, %93 : vector<8x128xf32>
    %95 = arith.addf %90, %94 : vector<8x128xf32>
    %cst_41 = arith.constant -1.250000e+01 : f32
    %96 = vector.broadcast %cst_41 : f32 to vector<8x128xf32>
    %97 = arith.mulf %95, %96 : vector<8x128xf32>
    %98 = math.exp %97 : vector<8x128xf32>
    %99 = arith.addf %79, %98 : vector<8x128xf32>
    %cst_42 = arith.constant 0.000000e+00 : f32
    %100 = vector.broadcast %cst_42 : f32 to vector<8x128xf32>
    %c0_43 = arith.constant 0 : index
    %c3 = arith.constant 3 : index
    %101 = vector.load %arg11[%c0_43, %c3] : memref<8x12xf32, #tpu.memory_space<vmem>>, vector<8x1xf32>
    %102 = vector.broadcast %101 : vector<8x1xf32> to vector<8x128xf32>
    %103 = arith.subf %33, %102 : vector<8x128xf32>
    %104 = arith.mulf %103, %103 : vector<8x128xf32>
    %105 = arith.addf %100, %104 : vector<8x128xf32>
    %c0_44 = arith.constant 0 : index
    %c7 = arith.constant 7 : index
    %106 = vector.load %arg11[%c0_44, %c7] : memref<8x12xf32, #tpu.memory_space<vmem>>, vector<8x1xf32>
    %107 = vector.broadcast %106 : vector<8x1xf32> to vector<8x128xf32>
    %108 = arith.subf %36, %107 : vector<8x128xf32>
    %109 = arith.mulf %108, %108 : vector<8x128xf32>
    %110 = arith.addf %105, %109 : vector<8x128xf32>
    %c0_45 = arith.constant 0 : index
    %c11 = arith.constant 11 : index
    %111 = vector.load %arg11[%c0_45, %c11] : memref<8x12xf32, #tpu.memory_space<vmem>>, vector<8x1xf32>
    %112 = vector.broadcast %111 : vector<8x1xf32> to vector<8x128xf32>
    %113 = arith.subf %39, %112 : vector<8x128xf32>
    %114 = arith.mulf %113, %113 : vector<8x128xf32>
    %115 = arith.addf %110, %114 : vector<8x128xf32>
    %cst_46 = arith.constant -1.250000e+01 : f32
    %116 = vector.broadcast %cst_46 : f32 to vector<8x128xf32>
    %117 = arith.mulf %115, %116 : vector<8x128xf32>
    %118 = math.exp %117 : vector<8x128xf32>
    %119 = arith.addf %99, %118 : vector<8x128xf32>
    %120 = vector.extract_strided_slice %1 {offsets = [12, 0], sizes = [1, 128], strides = [1, 1]} : vector<21x128xf32> to vector<1x128xf32>
    %121 = vector.shape_cast %120 : vector<1x128xf32> to vector<1x128xf32>
    %122 = vector.broadcast %121 : vector<1x128xf32> to vector<8x128xf32>
    %123 = vector.extract_strided_slice %1 {offsets = [15, 0], sizes = [1, 128], strides = [1, 1]} : vector<21x128xf32> to vector<1x128xf32>
    %124 = vector.shape_cast %123 : vector<1x128xf32> to vector<1x128xf32>
    %125 = vector.broadcast %124 : vector<1x128xf32> to vector<8x128xf32>
    %126 = vector.extract_strided_slice %1 {offsets = [18, 0], sizes = [1, 128], strides = [1, 1]} : vector<21x128xf32> to vector<1x128xf32>
    %127 = vector.shape_cast %126 : vector<1x128xf32> to vector<1x128xf32>
    %128 = vector.broadcast %127 : vector<1x128xf32> to vector<8x128xf32>
    %cst_47 = arith.constant 0.000000e+00 : f32
    %129 = vector.broadcast %cst_47 : f32 to vector<8x128xf32>
    %c0_48 = arith.constant 0 : index
    %c0_49 = arith.constant 0 : index
    %130 = vector.load %arg11[%c0_48, %c0_49] : memref<8x12xf32, #tpu.memory_space<vmem>>, vector<8x1xf32>
    %131 = vector.broadcast %130 : vector<8x1xf32> to vector<8x128xf32>
    %132 = arith.subf %122, %131 : vector<8x128xf32>
    %133 = arith.mulf %132, %132 : vector<8x128xf32>
    %134 = arith.addf %129, %133 : vector<8x128xf32>
    %c0_50 = arith.constant 0 : index
    %c4_51 = arith.constant 4 : index
    %135 = vector.load %arg11[%c0_50, %c4_51] : memref<8x12xf32, #tpu.memory_space<vmem>>, vector<8x1xf32>
    %136 = vector.broadcast %135 : vector<8x1xf32> to vector<8x128xf32>
    %137 = arith.subf %125, %136 : vector<8x128xf32>
    %138 = arith.mulf %137, %137 : vector<8x128xf32>
    %139 = arith.addf %134, %138 : vector<8x128xf32>
    %c0_52 = arith.constant 0 : index
    %c8_53 = arith.constant 8 : index
    %140 = vector.load %arg11[%c0_52, %c8_53] : memref<8x12xf32, #tpu.memory_space<vmem>>, vector<8x1xf32>
    %141 = vector.broadcast %140 : vector<8x1xf32> to vector<8x128xf32>
    %142 = arith.subf %128, %141 : vector<8x128xf32>
    %143 = arith.mulf %142, %142 : vector<8x128xf32>
    %144 = arith.addf %139, %143 : vector<8x128xf32>
    %cst_54 = arith.constant -1.250000e+01 : f32
    %145 = vector.broadcast %cst_54 : f32 to vector<8x128xf32>
    %146 = arith.mulf %144, %145 : vector<8x128xf32>
    %147 = math.exp %146 : vector<8x128xf32>
    %148 = arith.addf %119, %147 : vector<8x128xf32>
    %cst_55 = arith.constant 0.000000e+00 : f32
    %149 = vector.broadcast %cst_55 : f32 to vector<8x128xf32>
    %c0_56 = arith.constant 0 : index
    %c1_57 = arith.constant 1 : index
    %150 = vector.load %arg11[%c0_56, %c1_57] : memref<8x12xf32, #tpu.memory_space<vmem>>, vector<8x1xf32>
    %151 = vector.broadcast %150 : vector<8x1xf32> to vector<8x128xf32>
    %152 = arith.subf %122, %151 : vector<8x128xf32>
    %153 = arith.mulf %152, %152 : vector<8x128xf32>
    %154 = arith.addf %149, %153 : vector<8x128xf32>
    %c0_58 = arith.constant 0 : index
    %c5_59 = arith.constant 5 : index
    %155 = vector.load %arg11[%c0_58, %c5_59] : memref<8x12xf32, #tpu.memory_space<vmem>>, vector<8x1xf32>
    %156 = vector.broadcast %155 : vector<8x1xf32> to vector<8x128xf32>
    %157 = arith.subf %125, %156 : vector<8x128xf32>
    %158 = arith.mulf %157, %157 : vector<8x128xf32>
    %159 = arith.addf %154, %158 : vector<8x128xf32>
    %c0_60 = arith.constant 0 : index
    %c9_61 = arith.constant 9 : index
    %160 = vector.load %arg11[%c0_60, %c9_61] : memref<8x12xf32, #tpu.memory_space<vmem>>, vector<8x1xf32>
    %161 = vector.broadcast %160 : vector<8x1xf32> to vector<8x128xf32>
    %162 = arith.subf %128, %161 : vector<8x128xf32>
    %163 = arith.mulf %162, %162 : vector<8x128xf32>
    %164 = arith.addf %159, %163 : vector<8x128xf32>
    %cst_62 = arith.constant -1.250000e+01 : f32
    %165 = vector.broadcast %cst_62 : f32 to vector<8x128xf32>
    %166 = arith.mulf %164, %165 : vector<8x128xf32>
    %167 = math.exp %166 : vector<8x128xf32>
    %168 = arith.addf %148, %167 : vector<8x128xf32>
    %cst_63 = arith.constant 0.000000e+00 : f32
    %169 = vector.broadcast %cst_63 : f32 to vector<8x128xf32>
    %c0_64 = arith.constant 0 : index
    %c2_65 = arith.constant 2 : index
    %170 = vector.load %arg11[%c0_64, %c2_65] : memref<8x12xf32, #tpu.memory_space<vmem>>, vector<8x1xf32>
    %171 = vector.broadcast %170 : vector<8x1xf32> to vector<8x128xf32>
    %172 = arith.subf %122, %171 : vector<8x128xf32>
    %173 = arith.mulf %172, %172 : vector<8x128xf32>
    %174 = arith.addf %169, %173 : vector<8x128xf32>
    %c0_66 = arith.constant 0 : index
    %c6_67 = arith.constant 6 : index
    %175 = vector.load %arg11[%c0_66, %c6_67] : memref<8x12xf32, #tpu.memory_space<vmem>>, vector<8x1xf32>
    %176 = vector.broadcast %175 : vector<8x1xf32> to vector<8x128xf32>
    %177 = arith.subf %125, %176 : vector<8x128xf32>
    %178 = arith.mulf %177, %177 : vector<8x128xf32>
    %179 = arith.addf %174, %178 : vector<8x128xf32>
    %c0_68 = arith.constant 0 : index
    %c10_69 = arith.constant 10 : index
    %180 = vector.load %arg11[%c0_68, %c10_69] : memref<8x12xf32, #tpu.memory_space<vmem>>, vector<8x1xf32>
    %181 = vector.broadcast %180 : vector<8x1xf32> to vector<8x128xf32>
    %182 = arith.subf %128, %181 : vector<8x128xf32>
    %183 = arith.mulf %182, %182 : vector<8x128xf32>
    %184 = arith.addf %179, %183 : vector<8x128xf32>
    %cst_70 = arith.constant -1.250000e+01 : f32
    %185 = vector.broadcast %cst_70 : f32 to vector<8x128xf32>
    %186 = arith.mulf %184, %185 : vector<8x128xf32>
    %187 = math.exp %186 : vector<8x128xf32>
    %188 = arith.addf %168, %187 : vector<8x128xf32>
    %cst_71 = arith.constant 0.000000e+00 : f32
    %189 = vector.broadcast %cst_71 : f32 to vector<8x128xf32>
    %c0_72 = arith.constant 0 : index
    %c3_73 = arith.constant 3 : index
    %190 = vector.load %arg11[%c0_72, %c3_73] : memref<8x12xf32, #tpu.memory_space<vmem>>, vector<8x1xf32>
    %191 = vector.broadcast %190 : vector<8x1xf32> to vector<8x128xf32>
    %192 = arith.subf %122, %191 : vector<8x128xf32>
    %193 = arith.mulf %192, %192 : vector<8x128xf32>
    %194 = arith.addf %189, %193 : vector<8x128xf32>
    %c0_74 = arith.constant 0 : index
    %c7_75 = arith.constant 7 : index
    %195 = vector.load %arg11[%c0_74, %c7_75] : memref<8x12xf32, #tpu.memory_space<vmem>>, vector<8x1xf32>
    %196 = vector.broadcast %195 : vector<8x1xf32> to vector<8x128xf32>
    %197 = arith.subf %125, %196 : vector<8x128xf32>
    %198 = arith.mulf %197, %197 : vector<8x128xf32>
    %199 = arith.addf %194, %198 : vector<8x128xf32>
    %c0_76 = arith.constant 0 : index
    %c11_77 = arith.constant 11 : index
    %200 = vector.load %arg11[%c0_76, %c11_77] : memref<8x12xf32, #tpu.memory_space<vmem>>, vector<8x1xf32>
    %201 = vector.broadcast %200 : vector<8x1xf32> to vector<8x128xf32>
    %202 = arith.subf %128, %201 : vector<8x128xf32>
    %203 = arith.mulf %202, %202 : vector<8x128xf32>
    %204 = arith.addf %199, %203 : vector<8x128xf32>
    %cst_78 = arith.constant -1.250000e+01 : f32
    %205 = vector.broadcast %cst_78 : f32 to vector<8x128xf32>
    %206 = arith.mulf %204, %205 : vector<8x128xf32>
    %207 = math.exp %206 : vector<8x128xf32>
    %208 = arith.addf %188, %207 : vector<8x128xf32>
    %209 = vector.extract_strided_slice %1 {offsets = [13, 0], sizes = [1, 128], strides = [1, 1]} : vector<21x128xf32> to vector<1x128xf32>
    %210 = vector.shape_cast %209 : vector<1x128xf32> to vector<1x128xf32>
    %211 = vector.broadcast %210 : vector<1x128xf32> to vector<8x128xf32>
    %212 = vector.extract_strided_slice %1 {offsets = [16, 0], sizes = [1, 128], strides = [1, 1]} : vector<21x128xf32> to vector<1x128xf32>
    %213 = vector.shape_cast %212 : vector<1x128xf32> to vector<1x128xf32>
    %214 = vector.broadcast %213 : vector<1x128xf32> to vector<8x128xf32>
    %215 = vector.extract_strided_slice %1 {offsets = [19, 0], sizes = [1, 128], strides = [1, 1]} : vector<21x128xf32> to vector<1x128xf32>
    %216 = vector.shape_cast %215 : vector<1x128xf32> to vector<1x128xf32>
    %217 = vector.broadcast %216 : vector<1x128xf32> to vector<8x128xf32>
    %cst_79 = arith.constant 0.000000e+00 : f32
    %218 = vector.broadcast %cst_79 : f32 to vector<8x128xf32>
    %c0_80 = arith.constant 0 : index
    %c0_81 = arith.constant 0 : index
    %219 = vector.load %arg11[%c0_80, %c0_81] : memref<8x12xf32, #tpu.memory_space<vmem>>, vector<8x1xf32>
    %220 = vector.broadcast %219 : vector<8x1xf32> to vector<8x128xf32>
    %221 = arith.subf %211, %220 : vector<8x128xf32>
    %222 = arith.mulf %221, %221 : vector<8x128xf32>
    %223 = arith.addf %218, %222 : vector<8x128xf32>
    %c0_82 = arith.constant 0 : index
    %c4_83 = arith.constant 4 : index
    %224 = vector.load %arg11[%c0_82, %c4_83] : memref<8x12xf32, #tpu.memory_space<vmem>>, vector<8x1xf32>
    %225 = vector.broadcast %224 : vector<8x1xf32> to vector<8x128xf32>
    %226 = arith.subf %214, %225 : vector<8x128xf32>
    %227 = arith.mulf %226, %226 : vector<8x128xf32>
    %228 = arith.addf %223, %227 : vector<8x128xf32>
    %c0_84 = arith.constant 0 : index
    %c8_85 = arith.constant 8 : index
    %229 = vector.load %arg11[%c0_84, %c8_85] : memref<8x12xf32, #tpu.memory_space<vmem>>, vector<8x1xf32>
    %230 = vector.broadcast %229 : vector<8x1xf32> to vector<8x128xf32>
    %231 = arith.subf %217, %230 : vector<8x128xf32>
    %232 = arith.mulf %231, %231 : vector<8x128xf32>
    %233 = arith.addf %228, %232 : vector<8x128xf32>
    %cst_86 = arith.constant -1.250000e+01 : f32
    %234 = vector.broadcast %cst_86 : f32 to vector<8x128xf32>
    %235 = arith.mulf %233, %234 : vector<8x128xf32>
    %236 = math.exp %235 : vector<8x128xf32>
    %237 = arith.addf %208, %236 : vector<8x128xf32>
    %cst_87 = arith.constant 0.000000e+00 : f32
    %238 = vector.broadcast %cst_87 : f32 to vector<8x128xf32>
    %c0_88 = arith.constant 0 : index
    %c1_89 = arith.constant 1 : index
    %239 = vector.load %arg11[%c0_88, %c1_89] : memref<8x12xf32, #tpu.memory_space<vmem>>, vector<8x1xf32>
    %240 = vector.broadcast %239 : vector<8x1xf32> to vector<8x128xf32>
    %241 = arith.subf %211, %240 : vector<8x128xf32>
    %242 = arith.mulf %241, %241 : vector<8x128xf32>
    %243 = arith.addf %238, %242 : vector<8x128xf32>
    %c0_90 = arith.constant 0 : index
    %c5_91 = arith.constant 5 : index
    %244 = vector.load %arg11[%c0_90, %c5_91] : memref<8x12xf32, #tpu.memory_space<vmem>>, vector<8x1xf32>
    %245 = vector.broadcast %244 : vector<8x1xf32> to vector<8x128xf32>
    %246 = arith.subf %214, %245 : vector<8x128xf32>
    %247 = arith.mulf %246, %246 : vector<8x128xf32>
    %248 = arith.addf %243, %247 : vector<8x128xf32>
    %c0_92 = arith.constant 0 : index
    %c9_93 = arith.constant 9 : index
    %249 = vector.load %arg11[%c0_92, %c9_93] : memref<8x12xf32, #tpu.memory_space<vmem>>, vector<8x1xf32>
    %250 = vector.broadcast %249 : vector<8x1xf32> to vector<8x128xf32>
    %251 = arith.subf %217, %250 : vector<8x128xf32>
    %252 = arith.mulf %251, %251 : vector<8x128xf32>
    %253 = arith.addf %248, %252 : vector<8x128xf32>
    %cst_94 = arith.constant -1.250000e+01 : f32
    %254 = vector.broadcast %cst_94 : f32 to vector<8x128xf32>
    %255 = arith.mulf %253, %254 : vector<8x128xf32>
    %256 = math.exp %255 : vector<8x128xf32>
    %257 = arith.addf %237, %256 : vector<8x128xf32>
    %cst_95 = arith.constant 0.000000e+00 : f32
    %258 = vector.broadcast %cst_95 : f32 to vector<8x128xf32>
    %c0_96 = arith.constant 0 : index
    %c2_97 = arith.constant 2 : index
    %259 = vector.load %arg11[%c0_96, %c2_97] : memref<8x12xf32, #tpu.memory_space<vmem>>, vector<8x1xf32>
    %260 = vector.broadcast %259 : vector<8x1xf32> to vector<8x128xf32>
    %261 = arith.subf %211, %260 : vector<8x128xf32>
    %262 = arith.mulf %261, %261 : vector<8x128xf32>
    %263 = arith.addf %258, %262 : vector<8x128xf32>
    %c0_98 = arith.constant 0 : index
    %c6_99 = arith.constant 6 : index
    %264 = vector.load %arg11[%c0_98, %c6_99] : memref<8x12xf32, #tpu.memory_space<vmem>>, vector<8x1xf32>
    %265 = vector.broadcast %264 : vector<8x1xf32> to vector<8x128xf32>
    %266 = arith.subf %214, %265 : vector<8x128xf32>
    %267 = arith.mulf %266, %266 : vector<8x128xf32>
    %268 = arith.addf %263, %267 : vector<8x128xf32>
    %c0_100 = arith.constant 0 : index
    %c10_101 = arith.constant 10 : index
    %269 = vector.load %arg11[%c0_100, %c10_101] : memref<8x12xf32, #tpu.memory_space<vmem>>, vector<8x1xf32>
    %270 = vector.broadcast %269 : vector<8x1xf32> to vector<8x128xf32>
    %271 = arith.subf %217, %270 : vector<8x128xf32>
    %272 = arith.mulf %271, %271 : vector<8x128xf32>
    %273 = arith.addf %268, %272 : vector<8x128xf32>
    %cst_102 = arith.constant -1.250000e+01 : f32
    %274 = vector.broadcast %cst_102 : f32 to vector<8x128xf32>
    %275 = arith.mulf %273, %274 : vector<8x128xf32>
    %276 = math.exp %275 : vector<8x128xf32>
    %277 = arith.addf %257, %276 : vector<8x128xf32>
    %cst_103 = arith.constant 0.000000e+00 : f32
    %278 = vector.broadcast %cst_103 : f32 to vector<8x128xf32>
    %c0_104 = arith.constant 0 : index
    %c3_105 = arith.constant 3 : index
    %279 = vector.load %arg11[%c0_104, %c3_105] : memref<8x12xf32, #tpu.memory_space<vmem>>, vector<8x1xf32>
    %280 = vector.broadcast %279 : vector<8x1xf32> to vector<8x128xf32>
    %281 = arith.subf %211, %280 : vector<8x128xf32>
    %282 = arith.mulf %281, %281 : vector<8x128xf32>
    %283 = arith.addf %278, %282 : vector<8x128xf32>
    %c0_106 = arith.constant 0 : index
    %c7_107 = arith.constant 7 : index
    %284 = vector.load %arg11[%c0_106, %c7_107] : memref<8x12xf32, #tpu.memory_space<vmem>>, vector<8x1xf32>
    %285 = vector.broadcast %284 : vector<8x1xf32> to vector<8x128xf32>
    %286 = arith.subf %214, %285 : vector<8x128xf32>
    %287 = arith.mulf %286, %286 : vector<8x128xf32>
    %288 = arith.addf %283, %287 : vector<8x128xf32>
    %c0_108 = arith.constant 0 : index
    %c11_109 = arith.constant 11 : index
    %289 = vector.load %arg11[%c0_108, %c11_109] : memref<8x12xf32, #tpu.memory_space<vmem>>, vector<8x1xf32>
    %290 = vector.broadcast %289 : vector<8x1xf32> to vector<8x128xf32>
    %291 = arith.subf %217, %290 : vector<8x128xf32>
    %292 = arith.mulf %291, %291 : vector<8x128xf32>
    %293 = arith.addf %288, %292 : vector<8x128xf32>
    %cst_110 = arith.constant -1.250000e+01 : f32
    %294 = vector.broadcast %cst_110 : f32 to vector<8x128xf32>
    %295 = arith.mulf %293, %294 : vector<8x128xf32>
    %296 = math.exp %295 : vector<8x128xf32>
    %297 = arith.addf %277, %296 : vector<8x128xf32>
    %298 = vector.extract_strided_slice %1 {offsets = [14, 0], sizes = [1, 128], strides = [1, 1]} : vector<21x128xf32> to vector<1x128xf32>
    %299 = vector.shape_cast %298 : vector<1x128xf32> to vector<1x128xf32>
    %300 = vector.broadcast %299 : vector<1x128xf32> to vector<8x128xf32>
    %301 = vector.extract_strided_slice %1 {offsets = [17, 0], sizes = [1, 128], strides = [1, 1]} : vector<21x128xf32> to vector<1x128xf32>
    %302 = vector.shape_cast %301 : vector<1x128xf32> to vector<1x128xf32>
    %303 = vector.broadcast %302 : vector<1x128xf32> to vector<8x128xf32>
    %304 = vector.extract_strided_slice %1 {offsets = [20, 0], sizes = [1, 128], strides = [1, 1]} : vector<21x128xf32> to vector<1x128xf32>
    %305 = vector.shape_cast %304 : vector<1x128xf32> to vector<1x128xf32>
    %306 = vector.broadcast %305 : vector<1x128xf32> to vector<8x128xf32>
    %cst_111 = arith.constant 0.000000e+00 : f32
    %307 = vector.broadcast %cst_111 : f32 to vector<8x128xf32>
    %c0_112 = arith.constant 0 : index
    %c0_113 = arith.constant 0 : index
    %308 = vector.load %arg11[%c0_112, %c0_113] : memref<8x12xf32, #tpu.memory_space<vmem>>, vector<8x1xf32>
    %309 = vector.broadcast %308 : vector<8x1xf32> to vector<8x128xf32>
    %310 = arith.subf %300, %309 : vector<8x128xf32>
    %311 = arith.mulf %310, %310 : vector<8x128xf32>
    %312 = arith.addf %307, %311 : vector<8x128xf32>
    %c0_114 = arith.constant 0 : index
    %c4_115 = arith.constant 4 : index
    %313 = vector.load %arg11[%c0_114, %c4_115] : memref<8x12xf32, #tpu.memory_space<vmem>>, vector<8x1xf32>
    %314 = vector.broadcast %313 : vector<8x1xf32> to vector<8x128xf32>
    %315 = arith.subf %303, %314 : vector<8x128xf32>
    %316 = arith.mulf %315, %315 : vector<8x128xf32>
    %317 = arith.addf %312, %316 : vector<8x128xf32>
    %c0_116 = arith.constant 0 : index
    %c8_117 = arith.constant 8 : index
    %318 = vector.load %arg11[%c0_116, %c8_117] : memref<8x12xf32, #tpu.memory_space<vmem>>, vector<8x1xf32>
    %319 = vector.broadcast %318 : vector<8x1xf32> to vector<8x128xf32>
    %320 = arith.subf %306, %319 : vector<8x128xf32>
    %321 = arith.mulf %320, %320 : vector<8x128xf32>
    %322 = arith.addf %317, %321 : vector<8x128xf32>
    %cst_118 = arith.constant -1.250000e+01 : f32
    %323 = vector.broadcast %cst_118 : f32 to vector<8x128xf32>
    %324 = arith.mulf %322, %323 : vector<8x128xf32>
    %325 = math.exp %324 : vector<8x128xf32>
    %326 = arith.addf %297, %325 : vector<8x128xf32>
    %cst_119 = arith.constant 0.000000e+00 : f32
    %327 = vector.broadcast %cst_119 : f32 to vector<8x128xf32>
    %c0_120 = arith.constant 0 : index
    %c1_121 = arith.constant 1 : index
    %328 = vector.load %arg11[%c0_120, %c1_121] : memref<8x12xf32, #tpu.memory_space<vmem>>, vector<8x1xf32>
    %329 = vector.broadcast %328 : vector<8x1xf32> to vector<8x128xf32>
    %330 = arith.subf %300, %329 : vector<8x128xf32>
    %331 = arith.mulf %330, %330 : vector<8x128xf32>
    %332 = arith.addf %327, %331 : vector<8x128xf32>
    %c0_122 = arith.constant 0 : index
    %c5_123 = arith.constant 5 : index
    %333 = vector.load %arg11[%c0_122, %c5_123] : memref<8x12xf32, #tpu.memory_space<vmem>>, vector<8x1xf32>
    %334 = vector.broadcast %333 : vector<8x1xf32> to vector<8x128xf32>
    %335 = arith.subf %303, %334 : vector<8x128xf32>
    %336 = arith.mulf %335, %335 : vector<8x128xf32>
    %337 = arith.addf %332, %336 : vector<8x128xf32>
    %c0_124 = arith.constant 0 : index
    %c9_125 = arith.constant 9 : index
    %338 = vector.load %arg11[%c0_124, %c9_125] : memref<8x12xf32, #tpu.memory_space<vmem>>, vector<8x1xf32>
    %339 = vector.broadcast %338 : vector<8x1xf32> to vector<8x128xf32>
    %340 = arith.subf %306, %339 : vector<8x128xf32>
    %341 = arith.mulf %340, %340 : vector<8x128xf32>
    %342 = arith.addf %337, %341 : vector<8x128xf32>
    %cst_126 = arith.constant -1.250000e+01 : f32
    %343 = vector.broadcast %cst_126 : f32 to vector<8x128xf32>
    %344 = arith.mulf %342, %343 : vector<8x128xf32>
    %345 = math.exp %344 : vector<8x128xf32>
    %346 = arith.addf %326, %345 : vector<8x128xf32>
    %cst_127 = arith.constant 0.000000e+00 : f32
    %347 = vector.broadcast %cst_127 : f32 to vector<8x128xf32>
    %c0_128 = arith.constant 0 : index
    %c2_129 = arith.constant 2 : index
    %348 = vector.load %arg11[%c0_128, %c2_129] : memref<8x12xf32, #tpu.memory_space<vmem>>, vector<8x1xf32>
    %349 = vector.broadcast %348 : vector<8x1xf32> to vector<8x128xf32>
    %350 = arith.subf %300, %349 : vector<8x128xf32>
    %351 = arith.mulf %350, %350 : vector<8x128xf32>
    %352 = arith.addf %347, %351 : vector<8x128xf32>
    %c0_130 = arith.constant 0 : index
    %c6_131 = arith.constant 6 : index
    %353 = vector.load %arg11[%c0_130, %c6_131] : memref<8x12xf32, #tpu.memory_space<vmem>>, vector<8x1xf32>
    %354 = vector.broadcast %353 : vector<8x1xf32> to vector<8x128xf32>
    %355 = arith.subf %303, %354 : vector<8x128xf32>
    %356 = arith.mulf %355, %355 : vector<8x128xf32>
    %357 = arith.addf %352, %356 : vector<8x128xf32>
    %c0_132 = arith.constant 0 : index
    %c10_133 = arith.constant 10 : index
    %358 = vector.load %arg11[%c0_132, %c10_133] : memref<8x12xf32, #tpu.memory_space<vmem>>, vector<8x1xf32>
    %359 = vector.broadcast %358 : vector<8x1xf32> to vector<8x128xf32>
    %360 = arith.subf %306, %359 : vector<8x128xf32>
    %361 = arith.mulf %360, %360 : vector<8x128xf32>
    %362 = arith.addf %357, %361 : vector<8x128xf32>
    %cst_134 = arith.constant -1.250000e+01 : f32
    %363 = vector.broadcast %cst_134 : f32 to vector<8x128xf32>
    %364 = arith.mulf %362, %363 : vector<8x128xf32>
    %365 = math.exp %364 : vector<8x128xf32>
    %366 = arith.addf %346, %365 : vector<8x128xf32>
    %cst_135 = arith.constant 0.000000e+00 : f32
    %367 = vector.broadcast %cst_135 : f32 to vector<8x128xf32>
    %c0_136 = arith.constant 0 : index
    %c3_137 = arith.constant 3 : index
    %368 = vector.load %arg11[%c0_136, %c3_137] : memref<8x12xf32, #tpu.memory_space<vmem>>, vector<8x1xf32>
    %369 = vector.broadcast %368 : vector<8x1xf32> to vector<8x128xf32>
    %370 = arith.subf %300, %369 : vector<8x128xf32>
    %371 = arith.mulf %370, %370 : vector<8x128xf32>
    %372 = arith.addf %367, %371 : vector<8x128xf32>
    %c0_138 = arith.constant 0 : index
    %c7_139 = arith.constant 7 : index
    %373 = vector.load %arg11[%c0_138, %c7_139] : memref<8x12xf32, #tpu.memory_space<vmem>>, vector<8x1xf32>
    %374 = vector.broadcast %373 : vector<8x1xf32> to vector<8x128xf32>
    %375 = arith.subf %303, %374 : vector<8x128xf32>
    %376 = arith.mulf %375, %375 : vector<8x128xf32>
    %377 = arith.addf %372, %376 : vector<8x128xf32>
    %c0_140 = arith.constant 0 : index
    %c11_141 = arith.constant 11 : index
    %378 = vector.load %arg11[%c0_140, %c11_141] : memref<8x12xf32, #tpu.memory_space<vmem>>, vector<8x1xf32>
    %379 = vector.broadcast %378 : vector<8x1xf32> to vector<8x128xf32>
    %380 = arith.subf %306, %379 : vector<8x128xf32>
    %381 = arith.mulf %380, %380 : vector<8x128xf32>
    %382 = arith.addf %377, %381 : vector<8x128xf32>
    %cst_142 = arith.constant -1.250000e+01 : f32
    %383 = vector.broadcast %cst_142 : f32 to vector<8x128xf32>
    %384 = arith.mulf %382, %383 : vector<8x128xf32>
    %385 = math.exp %384 : vector<8x128xf32>
    %386 = arith.addf %366, %385 : vector<8x128xf32>
    %c0_143 = arith.constant 0 : index
    %c0_144 = arith.constant 0 : index
    %387 = vector.load %arg12[%c0_143, %c0_144] : memref<8x1xf32, #tpu.memory_space<vmem>>, vector<8x1xf32>
    %388 = vector.broadcast %387 : vector<8x1xf32> to vector<8x128xf32>
    %389 = arith.mulf %386, %388 : vector<8x128xf32>
    %c0_145 = arith.constant 0 : index
    %c0_146 = arith.constant 0 : index
    %390 = vector.load %arg13[%c0_145, %c0_146] : memref<8x1xf32, #tpu.memory_space<vmem>>, vector<8x1xf32>
    %391 = vector.broadcast %390 : vector<8x1xf32> to vector<8x128xf32>
    %392 = arith.addf %389, %391 : vector<8x128xf32>
    %cst_147 = arith.constant 0.000000e+00 : f32
    %393 = vector.broadcast %cst_147 : f32 to vector<8x128xf32>
    %394 = arith.maximumf %392, %393 : vector<8x128xf32>
    %c0_148 = arith.constant 0 : index
    %c0_149 = arith.constant 0 : index
    %395 = vector.load %arg14[%c0_148, %c0_149] : memref<131x64xf32, #tpu.memory_space<vmem>>, vector<131x64xf32>
    %cst_150 = arith.constant dense<0.000000e+00> : vector<131x128xf32>
    %396 = tpu.matmul %395, %29, %cst_150 {dimension_numbers = #tpu.dot_dimension_numbers<[1], [0], [0], [1], [0, 0, 1, 1], [], []>} : vector<131x64xf32>, vector<64x128xf32>, vector<131x128xf32> -> vector<131x128xf32>
    %c0_151 = arith.constant 0 : index
    %c0_152 = arith.constant 0 : index
    %397 = vector.load %arg15[%c0_151, %c0_152] : memref<131x8xf32, #tpu.memory_space<vmem>>, vector<131x8xf32>
    %cst_153 = arith.constant dense<0.000000e+00> : vector<131x128xf32>
    %398 = tpu.matmul %397, %394, %cst_153 {dimension_numbers = #tpu.dot_dimension_numbers<[1], [0], [0], [1], [0, 0, 1, 1], [], []>} : vector<131x8xf32>, vector<8x128xf32>, vector<131x128xf32> -> vector<131x128xf32>
    %399 = arith.addf %396, %398 : vector<131x128xf32>
    %c0_154 = arith.constant 0 : index
    %c0_155 = arith.constant 0 : index
    %400 = vector.load %arg16[%c0_154, %c0_155] : memref<131x21xf32, #tpu.memory_space<vmem>>, vector<131x21xf32>
    %cst_156 = arith.constant dense<0.000000e+00> : vector<131x128xf32>
    %401 = tpu.matmul %400, %1, %cst_156 {dimension_numbers = #tpu.dot_dimension_numbers<[1], [0], [0], [1], [0, 0, 1, 1], [], []>} : vector<131x21xf32>, vector<21x128xf32>, vector<131x128xf32> -> vector<131x128xf32>
    %402 = arith.addf %399, %401 : vector<131x128xf32>
    %c0_157 = arith.constant 0 : index
    %c0_158 = arith.constant 0 : index
    %403 = vector.load %arg17[%c0_157, %c0_158] : memref<131x1xf32, #tpu.memory_space<vmem>>, vector<131x1xf32>
    %404 = vector.broadcast %403 : vector<131x1xf32> to vector<131x128xf32>
    %405 = arith.addf %402, %404 : vector<131x128xf32>
    %cst_159 = arith.constant 0.000000e+00 : f32
    %406 = vector.broadcast %cst_159 : f32 to vector<131x128xf32>
    %407 = arith.maximumf %405, %406 : vector<131x128xf32>
    %c0_160 = arith.constant 0 : index
    %c0_161 = arith.constant 0 : index
    %408 = vector.load %arg18[%c0_160, %c0_161] : memref<131x131xf32, #tpu.memory_space<vmem>>, vector<131x131xf32>
    %cst_162 = arith.constant dense<0.000000e+00> : vector<131x128xf32>
    %409 = tpu.matmul %408, %407, %cst_162 {dimension_numbers = #tpu.dot_dimension_numbers<[1], [0], [0], [1], [0, 0, 1, 1], [], []>} : vector<131x131xf32>, vector<131x128xf32>, vector<131x128xf32> -> vector<131x128xf32>
    %c0_163 = arith.constant 0 : index
    %c0_164 = arith.constant 0 : index
    %410 = vector.load %arg19[%c0_163, %c0_164] : memref<131x1xf32, #tpu.memory_space<vmem>>, vector<131x1xf32>
    %411 = vector.broadcast %410 : vector<131x1xf32> to vector<131x128xf32>
    %412 = arith.addf %409, %411 : vector<131x128xf32>
    %cst_165 = arith.constant 0.000000e+00 : f32
    %413 = vector.broadcast %cst_165 : f32 to vector<131x128xf32>
    %414 = arith.maximumf %412, %413 : vector<131x128xf32>
    %c0_166 = arith.constant 0 : index
    %c0_167 = arith.constant 0 : index
    %c0_168 = arith.constant 0 : index
    %415 = vector.load %arg20[%c0_166, %c0_167, %c0_168] : memref<1x131x128xf32, #tpu.memory_space<vmem>>, vector<1x131x128xf32>
    %416 = vector.shape_cast %415 : vector<1x131x128xf32> to vector<131x128xf32>
    %417 = vector.shape_cast %414 : vector<131x128xf32> to vector<1x131x128xf32>
    tpu.vector_store %arg20[%c0_166, %c0_167, %c0_168], %417 {strides = array<i32>} : memref<1x131x128xf32, #tpu.memory_space<vmem>>, vector<1x131x128xf32>,
    return
  }
  func.func @transform_0(%arg0: i32, %arg1: i32) -> (i32, i32, i32) {
    %c0_i32 = arith.constant 0 : i32
    %c0_i32_0 = arith.constant 0 : i32
    return %arg0, %c0_i32, %arg1 : i32, i32, i32
  }
  func.func @transform_1(%arg0: i32, %arg1: i32) -> (i32, i32) {
    %c0_i32 = arith.constant 0 : i32
    %c0_i32_0 = arith.constant 0 : i32
    %c0_i32_1 = arith.constant 0 : i32
    return %c0_i32, %c0_i32_0 : i32, i32
  }
  func.func @transform_2(%arg0: i32, %arg1: i32) -> (i32, i32) {
    %c0_i32 = arith.constant 0 : i32
    %c0_i32_0 = arith.constant 0 : i32
    %c0_i32_1 = arith.constant 0 : i32
    return %c0_i32, %c0_i32_0 : i32, i32
  }
  func.func @transform_3(%arg0: i32, %arg1: i32) -> (i32, i32) {
    %c0_i32 = arith.constant 0 : i32
    %c0_i32_0 = arith.constant 0 : i32
    %c0_i32_1 = arith.constant 0 : i32
    return %c0_i32, %c0_i32_0 : i32, i32
  }
  func.func @transform_4(%arg0: i32, %arg1: i32) -> (i32, i32) {
    %c0_i32 = arith.constant 0 : i32
    %c0_i32_0 = arith.constant 0 : i32
    %c0_i32_1 = arith.constant 0 : i32
    return %c0_i32, %c0_i32_0 : i32, i32
  }
  func.func @transform_5(%arg0: i32, %arg1: i32) -> (i32, i32) {
    %c0_i32 = arith.constant 0 : i32
    %c0_i32_0 = arith.constant 0 : i32
    %c0_i32_1 = arith.constant 0 : i32
    return %c0_i32, %c0_i32_0 : i32, i32
  }
  func.func @transform_6(%arg0: i32, %arg1: i32) -> (i32, i32) {
    %c0_i32 = arith.constant 0 : i32
    %c0_i32_0 = arith.constant 0 : i32
    %c0_i32_1 = arith.constant 0 : i32
    return %c0_i32, %c0_i32_0 : i32, i32
  }
  func.func @transform_7(%arg0: i32, %arg1: i32) -> (i32, i32) {
    %c0_i32 = arith.constant 0 : i32
    %c0_i32_0 = arith.constant 0 : i32
    %c0_i32_1 = arith.constant 0 : i32
    return %c0_i32, %c0_i32_0 : i32, i32
  }
  func.func @transform_8(%arg0: i32, %arg1: i32) -> (i32, i32) {
    %c0_i32 = arith.constant 0 : i32
    %c0_i32_0 = arith.constant 0 : i32
    %c0_i32_1 = arith.constant 0 : i32
    return %c0_i32, %c0_i32_0 : i32, i32
  }
  func.func @transform_9(%arg0: i32, %arg1: i32) -> (i32, i32) {
    %c0_i32 = arith.constant 0 : i32
    %c0_i32_0 = arith.constant 0 : i32
    %c0_i32_1 = arith.constant 0 : i32
    return %c0_i32, %c0_i32_0 : i32, i32
  }
  func.func @transform_10(%arg0: i32, %arg1: i32) -> (i32, i32) {
    %c0_i32 = arith.constant 0 : i32
    %c0_i32_0 = arith.constant 0 : i32
    %c0_i32_1 = arith.constant 0 : i32
    return %c0_i32, %c0_i32_0 : i32, i32
  }
  func.func @transform_11(%arg0: i32, %arg1: i32) -> (i32, i32) {
    %c0_i32 = arith.constant 0 : i32
    %c0_i32_0 = arith.constant 0 : i32
    %c0_i32_1 = arith.constant 0 : i32
    return %c0_i32, %c0_i32_0 : i32, i32
  }
  func.func @transform_12(%arg0: i32, %arg1: i32) -> (i32, i32) {
    %c0_i32 = arith.constant 0 : i32
    %c0_i32_0 = arith.constant 0 : i32
    %c0_i32_1 = arith.constant 0 : i32
    return %c0_i32, %c0_i32_0 : i32, i32
  }
  func.func @transform_13(%arg0: i32, %arg1: i32) -> (i32, i32) {
    %c0_i32 = arith.constant 0 : i32
    %c0_i32_0 = arith.constant 0 : i32
    %c0_i32_1 = arith.constant 0 : i32
    return %c0_i32, %c0_i32_0 : i32, i32
  }
  func.func @transform_14(%arg0: i32, %arg1: i32) -> (i32, i32) {
    %c0_i32 = arith.constant 0 : i32
    %c0_i32_0 = arith.constant 0 : i32
    %c0_i32_1 = arith.constant 0 : i32
    return %c0_i32, %c0_i32_0 : i32, i32
  }
  func.func @transform_15(%arg0: i32, %arg1: i32) -> (i32, i32) {
    %c0_i32 = arith.constant 0 : i32
    %c0_i32_0 = arith.constant 0 : i32
    %c0_i32_1 = arith.constant 0 : i32
    return %c0_i32, %c0_i32_0 : i32, i32
  }
  func.func @transform_16(%arg0: i32, %arg1: i32) -> (i32, i32) {
    %c0_i32 = arith.constant 0 : i32
    %c0_i32_0 = arith.constant 0 : i32
    %c0_i32_1 = arith.constant 0 : i32
    return %c0_i32, %c0_i32_0 : i32, i32
  }
  func.func @transform_17(%arg0: i32, %arg1: i32) -> (i32, i32) {
    %c0_i32 = arith.constant 0 : i32
    %c0_i32_0 = arith.constant 0 : i32
    %c0_i32_1 = arith.constant 0 : i32
    return %c0_i32, %c0_i32_0 : i32, i32
  }
  func.func @transform_18(%arg0: i32, %arg1: i32) -> (i32, i32, i32) {
    %c0_i32 = arith.constant 0 : i32
    %c0_i32_0 = arith.constant 0 : i32
    return %arg0, %c0_i32, %arg1 : i32, i32, i32
  }
}

</mosaic_0001>

<llo_original>
// kernel: tpu_custom_call.1
$region0: #{tpu_custom_call.1}
  #allocation0 [shape = 'u32[]', space=smem, size = 0x4, offset = 0x4, fixed_abs, tag = 'smem constant byte address 0x4 - core index']
  #allocation1 [shape = 'u32[72,128]{1,0:T(1,128)}', space=vmem, size = 0x9000, scoped, tag = 'internal scratch']
  %s0 = inlined_call_operand.vmem [shape: f32[2,21,128], index: 0, kind: input, shape index: {}]
  %s1 = inlined_call_operand.vmem [shape: f32[96,21], index: 1, kind: input, shape index: {}]
  %s2 = inlined_call_operand.vmem [shape: f32[96,1], index: 2, kind: input, shape index: {}]
  %s3 = inlined_call_operand.vmem [shape: f32[96,96], index: 3, kind: input, shape index: {}]
  %s4 = inlined_call_operand.vmem [shape: f32[96,1], index: 4, kind: input, shape index: {}]
  %s5 = inlined_call_operand.vmem [shape: f32[64,96], index: 5, kind: input, shape index: {}]
  %s6 = inlined_call_operand.vmem [shape: f32[64,1], index: 6, kind: input, shape index: {}]
  %s7 = inlined_call_operand.vmem [shape: f32[64,64], index: 7, kind: input, shape index: {}]
  %s8 = inlined_call_operand.vmem [shape: f32[64,1], index: 8, kind: input, shape index: {}]
  %s9 = inlined_call_operand.vmem [shape: f32[8,12], index: 9, kind: input, shape index: {}]
  %s10 = inlined_call_operand.vmem [shape: f32[8,1], index: 10, kind: input, shape index: {}]
  %s11 = inlined_call_operand.vmem [shape: f32[8,1], index: 11, kind: input, shape index: {}]
  %s12 = inlined_call_operand.vmem [shape: f32[131,64], index: 12, kind: input, shape index: {}]
  %s13 = inlined_call_operand.vmem [shape: f32[131,8], index: 13, kind: input, shape index: {}]
  %s14 = inlined_call_operand.vmem [shape: f32[131,21], index: 14, kind: input, shape index: {}]
  %s15 = inlined_call_operand.vmem [shape: f32[131,1], index: 15, kind: input, shape index: {}]
  %s16 = inlined_call_operand.vmem [shape: f32[131,131], index: 16, kind: input, shape index: {}]
  %s17 = inlined_call_operand.vmem [shape: f32[131,1], index: 17, kind: input, shape index: {}]
  %s18 = inlined_call_operand.vmem [shape: f32[2,131,128], index: 18, kind: output, shape index: {}]
  %s19 = sld [smem:[#allocation0]]
  $region105: #{tpu_custom_call.1} parent=0
    _
  %s21 = ssub.s32 1, %s19
  %s22 = scalar_select 0, %s21, %s19
  loop: start=0, step=1, limit=4
  $region2: #{tpu_custom_call.1} parent=0 // loop_pre_header
    _
  $region3: #{tpu_custom_call.1} parent=0 // loop_header
    %s24 = sphi 0, %s28
    %p25 = scmp.ge.s32.totalorder %s24, 4
    %s31 = sphi 0, %s43
    %s32 = sphi 0, %s39
    %s33 = sphi 0, %s31
    %s34 = sphi 0, %s32
    %s35 = sphi 0, %s33
    %s36 = sphi 0, %s34
    %s48 = sphi 0, %s50
    %s51 = sphi 0, %s48
    %s52 = sphi 0, %s51
    %s68 = sphi 0, %s52
    %s72 = sphi 0, %s72
    %s74 = sphi 0, %s72
    %s75 = sphi 0, %s74
    %s89 = sphi 0, %s75
    %s93 = sphi 0, %s93
    %s95 = sphi 0, %s93
    %s96 = sphi 0, %s95
    %s110 = sphi 0, %s96
    %s114 = sphi 0, %s114
    %s116 = sphi 0, %s114
    %s117 = sphi 0, %s116
    %s131 = sphi 0, %s117
    %s135 = sphi 0, %s135
    %s137 = sphi 0, %s135
    %s138 = sphi 0, %s137
    %s152 = sphi 0, %s138
    %s156 = sphi 0, %s156
    %s158 = sphi 0, %s156
    %s159 = sphi 0, %s158
    %s173 = sphi 0, %s159
    %s177 = sphi 0, %s177
    %s179 = sphi 0, %s177
    %s180 = sphi 0, %s179
    %s194 = sphi 0, %s180
    %s198 = sphi 0, %s198
    %s200 = sphi 0, %s198
    %s201 = sphi 0, %s200
    %s215 = sphi 0, %s201
    %s219 = sphi 0, %s219
    %s221 = sphi 0, %s219
    %s222 = sphi 0, %s221
    %s236 = sphi 0, %s222
    %s240 = sphi 0, %s240
    %s242 = sphi 0, %s240
    %s243 = sphi 0, %s242
    %s257 = sphi 0, %s243
    %s261 = sphi 0, %s261
    %s263 = sphi 0, %s261
    %s264 = sphi 0, %s263
    %s278 = sphi 0, %s264
    %s282 = sphi 0, %s282
    %s284 = sphi 0, %s282
    %s285 = sphi 0, %s284
    %s299 = sphi 0, %s285
    %s303 = sphi 0, %s303
    %s305 = sphi 0, %s303
    %s306 = sphi 0, %s305
    %s320 = sphi 0, %s306
    %s324 = sphi 0, %s324
    %s326 = sphi 0, %s324
    %s327 = sphi 0, %s326
    %s341 = sphi 0, %s327
    %s345 = sphi 0, %s345
    %s347 = sphi 0, %s345
    %s348 = sphi 0, %s347
    %s362 = sphi 0, %s348
    %s366 = sphi 0, %s366
    %s368 = sphi 0, %s366
    %s369 = sphi 0, %s368
    %s383 = sphi 0, %s369
    %s387 = sphi 0, %s387
    %s389 = sphi 0, %s387
    %s390 = sphi 0, %s389
    %s404 = sphi 0, %s390
    %s408 = sphi 0, %s408
    %s410 = sphi 0, %s408
    %s411 = sphi 0, %s410
    %s425 = sphi 0, %s411
    %s433 = sphi 0, %s435
    %s436 = sphi 0, %s433
    %s437 = sphi 0, %s436
    %s453 = sphi 0, %s437
  $region4: #{tpu_custom_call.1} parent=0 // loop_header_branch
    %27 = sbr.rel (%p25) target = $region8
  $region5: #{tpu_custom_call.1} parent=0 // loop_body
    %s29 = ssub.s32 %s24, 1
    %s30 = ssub.s32 %s24, 2
    %s37 = sadd.s32 1, %s32
    %p38 = scmp.ge.s32.totalorder %s37, 1
    %s39 = scalar_select %p38, 0, %s37
    %s40 = sadd.s32 1, %s31
    %s41 = scalar_select %p38, %s40, %s31
    %p42 = scmp.ge.s32.totalorder %s41, 2
    %s43 = scalar_select %p42, 0, %s41
    %s44 = ssub.s32 %s31, %s43
    %s45 = ssub.s32 %s32, %s39
    %s46 = sor.u32 %s44, %s45
    %p47 = scmp.eq.s32.totalorder %s46, 0
    %s49 = sadd.s32 %s48, 1
    %s50 = scalar_select %p47, %s48, %s49
    %p53 = pneg %p47
    %p54 = scmp.eq.s32.totalorder %s24, 1
    %p55 = por %p53, %p54
    %p56 = scmp.ne.s32.totalorder %s48, %s51
    %p57 = scmp.eq.s32.totalorder %s24, 0
    %p58 = por %p56, %p57
    %p59 = scmp.ne.s32.totalorder %s48, %s51
    %p60 = scmp.eq.s32.totalorder %s29, 1
    %p61 = por %p59, %p60
    %p62 = scmp.ne.s32.totalorder %s51, %s52
    %p63 = scmp.eq.s32.totalorder %s29, 0
    %p64 = por %p62, %p63
    %p65 = scmp.ne.s32.totalorder %s51, %s52
    %p66 = scmp.eq.s32.totalorder %s30, 1
    %p67 = por %p65, %p66
    %p69 = scmp.ne.s32.totalorder %s52, %s68
    %p70 = scmp.eq.s32.totalorder %s30, 0
    %p71 = por %p69, %p70
    %s73 = sadd.s32 %s72, 1
    %p76 = scmp.eq.s32.totalorder %s24, 1
    %p77 = scmp.ne.s32.totalorder %s72, %s74
    %p78 = scmp.eq.s32.totalorder %s24, 0
    %p79 = por %p77, %p78
    %p80 = scmp.ne.s32.totalorder %s72, %s74
    %p81 = scmp.eq.s32.totalorder %s29, 1
    %p82 = por %p80, %p81
    %p83 = scmp.ne.s32.totalorder %s74, %s75
    %p84 = scmp.eq.s32.totalorder %s29, 0
    %p85 = por %p83, %p84
    %p86 = scmp.ne.s32.totalorder %s74, %s75
    %p87 = scmp.eq.s32.totalorder %s30, 1
    %p88 = por %p86, %p87
    %p90 = scmp.ne.s32.totalorder %s75, %s89
    %p91 = scmp.eq.s32.totalorder %s30, 0
    %p92 = por %p90, %p91
    %s94 = sadd.s32 %s93, 1
    %p97 = scmp.eq.s32.totalorder %s24, 1
    %p98 = scmp.ne.s32.totalorder %s93, %s95
    %p99 = scmp.eq.s32.totalorder %s24, 0
    %p100 = por %p98, %p99
    %p101 = scmp.ne.s32.totalorder %s93, %s95
    %p102 = scmp.eq.s32.totalorder %s29, 1
    %p103 = por %p101, %p102
    %p104 = scmp.ne.s32.totalorder %s95, %s96
    %p105 = scmp.eq.s32.totalorder %s29, 0
    %p106 = por %p104, %p105
    %p107 = scmp.ne.s32.totalorder %s95, %s96
    %p108 = scmp.eq.s32.totalorder %s30, 1
    %p109 = por %p107, %p108
    %p111 = scmp.ne.s32.totalorder %s96, %s110
    %p112 = scmp.eq.s32.totalorder %s30, 0
    %p113 = por %p111, %p112
    %s115 = sadd.s32 %s114, 1
    %p118 = scmp.eq.s32.totalorder %s24, 1
    %p119 = scmp.ne.s32.totalorder %s114, %s116
    %p120 = scmp.eq.s32.totalorder %s24, 0
    %p121 = por %p119, %p120
    %p122 = scmp.ne.s32.totalorder %s114, %s116
    %p123 = scmp.eq.s32.totalorder %s29, 1
    %p124 = por %p122, %p123
    %p125 = scmp.ne.s32.totalorder %s116, %s117
    %p126 = scmp.eq.s32.totalorder %s29, 0
    %p127 = por %p125, %p126
    %p128 = scmp.ne.s32.totalorder %s116, %s117
    %p129 = scmp.eq.s32.totalorder %s30, 1
    %p130 = por %p128, %p129
    %p132 = scmp.ne.s32.totalorder %s117, %s131
    %p133 = scmp.eq.s32.totalorder %s30, 0
    %p134 = por %p132, %p133
    %s136 = sadd.s32 %s135, 1
    %p139 = scmp.eq.s32.totalorder %s24, 1
    %p140 = scmp.ne.s32.totalorder %s135, %s137
    %p141 = scmp.eq.s32.totalorder %s24, 0
    %p142 = por %p140, %p141
    %p143 = scmp.ne.s32.totalorder %s135, %s137
    %p144 = scmp.eq.s32.totalorder %s29, 1
    %p145 = por %p143, %p144
    %p146 = scmp.ne.s32.totalorder %s137, %s138
    %p147 = scmp.eq.s32.totalorder %s29, 0
    %p148 = por %p146, %p147
    %p149 = scmp.ne.s32.totalorder %s137, %s138
    %p150 = scmp.eq.s32.totalorder %s30, 1
    %p151 = por %p149, %p150
    %p153 = scmp.ne.s32.totalorder %s138, %s152
    %p154 = scmp.eq.s32.totalorder %s30, 0
    %p155 = por %p153, %p154
    %s157 = sadd.s32 %s156, 1
    %p160 = scmp.eq.s32.totalorder %s24, 1
    %p161 = scmp.ne.s32.totalorder %s156, %s158
    %p162 = scmp.eq.s32.totalorder %s24, 0
    %p163 = por %p161, %p162
    %p164 = scmp.ne.s32.totalorder %s156, %s158
    %p165 = scmp.eq.s32.totalorder %s29, 1
    %p166 = por %p164, %p165
    %p167 = scmp.ne.s32.totalorder %s158, %s159
    %p168 = scmp.eq.s32.totalorder %s29, 0
    %p169 = por %p167, %p168
    %p170 = scmp.ne.s32.totalorder %s158, %s159
    %p171 = scmp.eq.s32.totalorder %s30, 1
    %p172 = por %p170, %p171
    %p174 = scmp.ne.s32.totalorder %s159, %s173
    %p175 = scmp.eq.s32.totalorder %s30, 0
    %p176 = por %p174, %p175
    %s178 = sadd.s32 %s177, 1
    %p181 = scmp.eq.s32.totalorder %s24, 1
    %p182 = scmp.ne.s32.totalorder %s177, %s179
    %p183 = scmp.eq.s32.totalorder %s24, 0
    %p184 = por %p182, %p183
    %p185 = scmp.ne.s32.totalorder %s177, %s179
    %p186 = scmp.eq.s32.totalorder %s29, 1
    %p187 = por %p185, %p186
    %p188 = scmp.ne.s32.totalorder %s179, %s180
    %p189 = scmp.eq.s32.totalorder %s29, 0
    %p190 = por %p188, %p189
    %p191 = scmp.ne.s32.totalorder %s179, %s180
    %p192 = scmp.eq.s32.totalorder %s30, 1
    %p193 = por %p191, %p192
    %p195 = scmp.ne.s32.totalorder %s180, %s194
    %p196 = scmp.eq.s32.totalorder %s30, 0
    %p197 = por %p195, %p196
    %s199 = sadd.s32 %s198, 1
    %p202 = scmp.eq.s32.totalorder %s24, 1
    %p203 = scmp.ne.s32.totalorder %s198, %s200
    %p204 = scmp.eq.s32.totalorder %s24, 0
    %p205 = por %p203, %p204
    %p206 = scmp.ne.s32.totalorder %s198, %s200
    %p207 = scmp.eq.s32.totalorder %s29, 1
    %p208 = por %p206, %p207
    %p209 = scmp.ne.s32.totalorder %s200, %s201
    %p210 = scmp.eq.s32.totalorder %s29, 0
    %p211 = por %p209, %p210
    %p212 = scmp.ne.s32.totalorder %s200, %s201
    %p213 = scmp.eq.s32.totalorder %s30, 1
    %p214 = por %p212, %p213
    %p216 = scmp.ne.s32.totalorder %s201, %s215
    %p217 = scmp.eq.s32.totalorder %s30, 0
    %p218 = por %p216, %p217
    %s220 = sadd.s32 %s219, 1
    %p223 = scmp.eq.s32.totalorder %s24, 1
    %p224 = scmp.ne.s32.totalorder %s219, %s221
    %p225 = scmp.eq.s32.totalorder %s24, 0
    %p226 = por %p224, %p225
    %p227 = scmp.ne.s32.totalorder %s219, %s221
    %p228 = scmp.eq.s32.totalorder %s29, 1
    %p229 = por %p227, %p228
    %p230 = scmp.ne.s32.totalorder %s221, %s222
    %p231 = scmp.eq.s32.totalorder %s29, 0
    %p232 = por %p230, %p231
    %p233 = scmp.ne.s32.totalorder %s221, %s222
    %p234 = scmp.eq.s32.totalorder %s30, 1
    %p235 = por %p233, %p234
    %p237 = scmp.ne.s32.totalorder %s222, %s236
    %p238 = scmp.eq.s32.totalorder %s30, 0
    %p239 = por %p237, %p238
    %s241 = sadd.s32 %s240, 1
    %p244 = scmp.eq.s32.totalorder %s24, 1
    %p245 = scmp.ne.s32.totalorder %s240, %s242
    %p246 = scmp.eq.s32.totalorder %s24, 0
    %p247 = por %p245, %p246
    %p248 = scmp.ne.s32.totalorder %s240, %s242
    %p249 = scmp.eq.s32.totalorder %s29, 1
    %p250 = por %p248, %p249
    %p251 = scmp.ne.s32.totalorder %s242, %s243
    %p252 = scmp.eq.s32.totalorder %s29, 0
    %p253 = por %p251, %p252
    %p254 = scmp.ne.s32.totalorder %s242, %s243
    %p255 = scmp.eq.s32.totalorder %s30, 1
    %p256 = por %p254, %p255
    %p258 = scmp.ne.s32.totalorder %s243, %s257
    %p259 = scmp.eq.s32.totalorder %s30, 0
    %p260 = por %p258, %p259
    %s262 = sadd.s32 %s261, 1
    %p265 = scmp.eq.s32.totalorder %s24, 1
    %p266 = scmp.ne.s32.totalorder %s261, %s263
    %p267 = scmp.eq.s32.totalorder %s24, 0
    %p268 = por %p266, %p267
    %p269 = scmp.ne.s32.totalorder %s261, %s263
    %p270 = scmp.eq.s32.totalorder %s29, 1
    %p271 = por %p269, %p270
    %p272 = scmp.ne.s32.totalorder %s263, %s264
    %p273 = scmp.eq.s32.totalorder %s29, 0
    %p274 = por %p272, %p273
    %p275 = scmp.ne.s32.totalorder %s263, %s264
    %p276 = scmp.eq.s32.totalorder %s30, 1
    %p277 = por %p275, %p276
    %p279 = scmp.ne.s32.totalorder %s264, %s278
    %p280 = scmp.eq.s32.totalorder %s30, 0
    %p281 = por %p279, %p280
    %s283 = sadd.s32 %s282, 1
    %p286 = scmp.eq.s32.totalorder %s24, 1
    %p287 = scmp.ne.s32.totalorder %s282, %s284
    %p288 = scmp.eq.s32.totalorder %s24, 0
    %p289 = por %p287, %p288
    %p290 = scmp.ne.s32.totalorder %s282, %s284
    %p291 = scmp.eq.s32.totalorder %s29, 1
    %p292 = por %p290, %p291
    %p293 = scmp.ne.s32.totalorder %s284, %s285
    %p294 = scmp.eq.s32.totalorder %s29, 0
    %p295 = por %p293, %p294
    %p296 = scmp.ne.s32.totalorder %s284, %s285
    %p297 = scmp.eq.s32.totalorder %s30, 1
    %p298 = por %p296, %p297
    %p300 = scmp.ne.s32.totalorder %s285, %s299
    %p301 = scmp.eq.s32.totalorder %s30, 0
    %p302 = por %p300, %p301
    %s304 = sadd.s32 %s303, 1
    %p307 = scmp.eq.s32.totalorder %s24, 1
    %p308 = scmp.ne.s32.totalorder %s303, %s305
    %p309 = scmp.eq.s32.totalorder %s24, 0
    %p310 = por %p308, %p309
    %p311 = scmp.ne.s32.totalorder %s303, %s305
    %p312 = scmp.eq.s32.totalorder %s29, 1
    %p313 = por %p311, %p312
    %p314 = scmp.ne.s32.totalorder %s305, %s306
    %p315 = scmp.eq.s32.totalorder %s29, 0
    %p316 = por %p314, %p315
    %p317 = scmp.ne.s32.totalorder %s305, %s306
    %p318 = scmp.eq.s32.totalorder %s30, 1
    %p319 = por %p317, %p318
    %p321 = scmp.ne.s32.totalorder %s306, %s320
    %p322 = scmp.eq.s32.totalorder %s30, 0
    %p323 = por %p321, %p322
    %s325 = sadd.s32 %s324, 1
    %p328 = scmp.eq.s32.totalorder %s24, 1
    %p329 = scmp.ne.s32.totalorder %s324, %s326
    %p330 = scmp.eq.s32.totalorder %s24, 0
    %p331 = por %p329, %p330
    %p332 = scmp.ne.s32.totalorder %s324, %s326
    %p333 = scmp.eq.s32.totalorder %s29, 1
    %p334 = por %p332, %p333
    %p335 = scmp.ne.s32.totalorder %s326, %s327
    %p336 = scmp.eq.s32.totalorder %s29, 0
    %p337 = por %p335, %p336
    %p338 = scmp.ne.s32.totalorder %s326, %s327
    %p339 = scmp.eq.s32.totalorder %s30, 1
    %p340 = por %p338, %p339
    %p342 = scmp.ne.s32.totalorder %s327, %s341
    %p343 = scmp.eq.s32.totalorder %s30, 0
    %p344 = por %p342, %p343
    %s346 = sadd.s32 %s345, 1
    %p349 = scmp.eq.s32.totalorder %s24, 1
    %p350 = scmp.ne.s32.totalorder %s345, %s347
    %p351 = scmp.eq.s32.totalorder %s24, 0
    %p352 = por %p350, %p351
    %p353 = scmp.ne.s32.totalorder %s345, %s347
    %p354 = scmp.eq.s32.totalorder %s29, 1
    %p355 = por %p353, %p354
    %p356 = scmp.ne.s32.totalorder %s347, %s348
    %p357 = scmp.eq.s32.totalorder %s29, 0
    %p358 = por %p356, %p357
    %p359 = scmp.ne.s32.totalorder %s347, %s348
    %p360 = scmp.eq.s32.totalorder %s30, 1
    %p361 = por %p359, %p360
    %p363 = scmp.ne.s32.totalorder %s348, %s362
    %p364 = scmp.eq.s32.totalorder %s30, 0
    %p365 = por %p363, %p364
    %s367 = sadd.s32 %s366, 1
    %p370 = scmp.eq.s32.totalorder %s24, 1
    %p371 = scmp.ne.s32.totalorder %s366, %s368
    %p372 = scmp.eq.s32.totalorder %s24, 0
    %p373 = por %p371, %p372
    %p374 = scmp.ne.s32.totalorder %s366, %s368
    %p375 = scmp.eq.s32.totalorder %s29, 1
    %p376 = por %p374, %p375
    %p377 = scmp.ne.s32.totalorder %s368, %s369
    %p378 = scmp.eq.s32.totalorder %s29, 0
    %p379 = por %p377, %p378
    %p380 = scmp.ne.s32.totalorder %s368, %s369
    %p381 = scmp.eq.s32.totalorder %s30, 1
    %p382 = por %p380, %p381
    %p384 = scmp.ne.s32.totalorder %s369, %s383
    %p385 = scmp.eq.s32.totalorder %s30, 0
    %p386 = por %p384, %p385
    %s388 = sadd.s32 %s387, 1
    %p391 = scmp.eq.s32.totalorder %s24, 1
    %p392 = scmp.ne.s32.totalorder %s387, %s389
    %p393 = scmp.eq.s32.totalorder %s24, 0
    %p394 = por %p392, %p393
    %p395 = scmp.ne.s32.totalorder %s387, %s389
    %p396 = scmp.eq.s32.totalorder %s29, 1
    %p397 = por %p395, %p396
    %p398 = scmp.ne.s32.totalorder %s389, %s390
    %p399 = scmp.eq.s32.totalorder %s29, 0
    %p400 = por %p398, %p399
    %p401 = scmp.ne.s32.totalorder %s389, %s390
    %p402 = scmp.eq.s32.totalorder %s30, 1
    %p403 = por %p401, %p402
    %p405 = scmp.ne.s32.totalorder %s390, %s404
    %p406 = scmp.eq.s32.totalorder %s30, 0
    %p407 = por %p405, %p406
    %s409 = sadd.s32 %s408, 1
    %p412 = scmp.eq.s32.totalorder %s24, 1
    %p413 = scmp.ne.s32.totalorder %s408, %s410
    %p414 = scmp.eq.s32.totalorder %s24, 0
    %p415 = por %p413, %p414
    %p416 = scmp.ne.s32.totalorder %s408, %s410
    %p417 = scmp.eq.s32.totalorder %s29, 1
    %p418 = por %p416, %p417
    %p419 = scmp.ne.s32.totalorder %s410, %s411
    %p420 = scmp.eq.s32.totalorder %s29, 0
    %p421 = por %p419, %p420
    %p422 = scmp.ne.s32.totalorder %s410, %s411
    %p423 = scmp.eq.s32.totalorder %s30, 1
    %p424 = por %p422, %p423
    %p426 = scmp.ne.s32.totalorder %s411, %s425
    %p427 = scmp.eq.s32.totalorder %s30, 0
    %p428 = por %p426, %p427
    %s429 = ssub.s32 %s31, %s43
    %s430 = ssub.s32 %s32, %s39
    %s431 = sor.u32 %s429, %s430
    %p432 = scmp.eq.s32.totalorder %s431, 0
    %s434 = sadd.s32 %s433, 1
    %s435 = scalar_select %p432, %s433, %s434
    %p438 = pneg %p432
    %p439 = scmp.eq.s32.totalorder %s24, 1
    %p440 = por %p438, %p439
    %p441 = scmp.ne.s32.totalorder %s433, %s436
    %p442 = scmp.eq.s32.totalorder %s24, 0
    %p443 = por %p441, %p442
    %p444 = scmp.ne.s32.totalorder %s433, %s436
    %p445 = scmp.eq.s32.totalorder %s29, 1
    %p446 = por %p444, %p445
    %p447 = scmp.ne.s32.totalorder %s436, %s437
    %p448 = scmp.eq.s32.totalorder %s29, 0
    %p449 = por %p447, %p448
    %p450 = scmp.ne.s32.totalorder %s436, %s437
    %p451 = scmp.eq.s32.totalorder %s30, 1
    %p452 = por %p450, %p451
    %p454 = scmp.ne.s32.totalorder %s437, %s453
    %p455 = scmp.eq.s32.totalorder %s30, 0
    %p456 = por %p454, %p455
    %p457 = scmp.le.s32.totalorder 1, %s24
    %p458 = scmp.lt.s32.totalorder %s24, 3
    %p459 = pnand %p457, %p458
    %p460 = pneg %p459
    // Predicated region
    $region9: #{tpu_custom_call.1} parent=5 // pred_check
      _
    $region10: #{tpu_custom_call.1} parent=5 // pred_check_branch
      %462 = sbr.rel (%p459) target = $region12
    $region11: #{tpu_custom_call.1} parent=5 // pred_region
      %s463 = ssub.s32 %s24, 1
      // Predicated region
      $region13: #{tpu_custom_call.1} parent=11 // pred_check
        %p464 = pneg %p85
      $region14: #{tpu_custom_call.1} parent=11 // pred_check_branch
        %466 = sbr.rel (%p464) target = $region16
      $region15: #{tpu_custom_call.1} parent=11 // pred_region
        _
      $region16: #{tpu_custom_call.1} parent=11 // pred_fallthru
        _
      // Predicated region
      $region17: #{tpu_custom_call.1} parent=11 // pred_check
        %p467 = pneg %p106
      $region18: #{tpu_custom_call.1} parent=11 // pred_check_branch
        %469 = sbr.rel (%p467) target = $region20
      $region19: #{tpu_custom_call.1} parent=11 // pred_region
        _
      $region20: #{tpu_custom_call.1} parent=11 // pred_fallthru
        _
      // Predicated region
      $region21: #{tpu_custom_call.1} parent=11 // pred_check
        %p470 = pneg %p127
      $region22: #{tpu_custom_call.1} parent=11 // pred_check_branch
        %472 = sbr.rel (%p470) target = $region24
      $region23: #{tpu_custom_call.1} parent=11 // pred_region
        _
      $region24: #{tpu_custom_call.1} parent=11 // pred_fallthru
        _
      // Predicated region
      $region25: #{tpu_custom_call.1} parent=11 // pred_check
        %p473 = pneg %p148
      $region26: #{tpu_custom_call.1} parent=11 // pred_check_branch
        %475 = sbr.rel (%p473) target = $region28
      $region27: #{tpu_custom_call.1} parent=11 // pred_region
        _
      $region28: #{tpu_custom_call.1} parent=11 // pred_fallthru
        _
      // Predicated region
      $region29: #{tpu_custom_call.1} parent=11 // pred_check
        %p476 = pneg %p169
      $region30: #{tpu_custom_call.1} parent=11 // pred_check_branch
        %478 = sbr.rel (%p476) target = $region32
      $region31: #{tpu_custom_call.1} parent=11 // pred_region
        _
      $region32: #{tpu_custom_call.1} parent=11 // pred_fallthru
        _
      // Predicated region
      $region33: #{tpu_custom_call.1} parent=11 // pred_check
        %p479 = pneg %p190
      $region34: #{tpu_custom_call.1} parent=11 // pred_check_branch
        %481 = sbr.rel (%p479) target = $region36
      $region35: #{tpu_custom_call.1} parent=11 // pred_region
        _
      $region36: #{tpu_custom_call.1} parent=11 // pred_fallthru
        _
      // Predicated region
      $region37: #{tpu_custom_call.1} parent=11 // pred_check
        %p482 = pneg %p211
      $region38: #{tpu_custom_call.1} parent=11 // pred_check_branch
        %484 = sbr.rel (%p482) target = $region40
      $region39: #{tpu_custom_call.1} parent=11 // pred_region
        _
      $region40: #{tpu_custom_call.1} parent=11 // pred_fallthru
        _
      // Predicated region
      $region41: #{tpu_custom_call.1} parent=11 // pred_check
        %p485 = pneg %p232
      $region42: #{tpu_custom_call.1} parent=11 // pred_check_branch
        %487 = sbr.rel (%p485) target = $region44
      $region43: #{tpu_custom_call.1} parent=11 // pred_region
        _
      $region44: #{tpu_custom_call.1} parent=11 // pred_fallthru
        _
      // Predicated region
      $region45: #{tpu_custom_call.1} parent=11 // pred_check
        %p488 = pneg %p253
      $region46: #{tpu_custom_call.1} parent=11 // pred_check_branch
        %490 = sbr.rel (%p488) target = $region48
      $region47: #{tpu_custom_call.1} parent=11 // pred_region
        _
      $region48: #{tpu_custom_call.1} parent=11 // pred_fallthru
        _
      // Predicated region
      $region49: #{tpu_custom_call.1} parent=11 // pred_check
        %p491 = pneg %p274
      $region50: #{tpu_custom_call.1} parent=11 // pred_check_branch
        %493 = sbr.rel (%p491) target = $region52
      $region51: #{tpu_custom_call.1} parent=11 // pred_region
        _
      $region52: #{tpu_custom_call.1} parent=11 // pred_fallthru
        _
      // Predicated region
      $region53: #{tpu_custom_call.1} parent=11 // pred_check
        %p494 = pneg %p295
      $region54: #{tpu_custom_call.1} parent=11 // pred_check_branch
        %496 = sbr.rel (%p494) target = $region56
      $region55: #{tpu_custom_call.1} parent=11 // pred_region
        _
      $region56: #{tpu_custom_call.1} parent=11 // pred_fallthru
        _
      // Predicated region
      $region57: #{tpu_custom_call.1} parent=11 // pred_check
        %p497 = pneg %p316
      $region58: #{tpu_custom_call.1} parent=11 // pred_check_branch
        %499 = sbr.rel (%p497) target = $region60
      $region59: #{tpu_custom_call.1} parent=11 // pred_region
        _
      $region60: #{tpu_custom_call.1} parent=11 // pred_fallthru
        _
      // Predicated region
      $region61: #{tpu_custom_call.1} parent=11 // pred_check
        %p500 = pneg %p337
      $region62: #{tpu_custom_call.1} parent=11 // pred_check_branch
        %502 = sbr.rel (%p500) target = $region64
      $region63: #{tpu_custom_call.1} parent=11 // pred_region
        _
      $region64: #{tpu_custom_call.1} parent=11 // pred_fallthru
        _
      // Predicated region
      $region65: #{tpu_custom_call.1} parent=11 // pred_check
        %p503 = pneg %p358
      $region66: #{tpu_custom_call.1} parent=11 // pred_check_branch
        %505 = sbr.rel (%p503) target = $region68
      $region67: #{tpu_custom_call.1} parent=11 // pred_region
        _
      $region68: #{tpu_custom_call.1} parent=11 // pred_fallthru
        _
      // Predicated region
      $region69: #{tpu_custom_call.1} parent=11 // pred_check
        %p506 = pneg %p379
      $region70: #{tpu_custom_call.1} parent=11 // pred_check_branch
        %508 = sbr.rel (%p506) target = $region72
      $region71: #{tpu_custom_call.1} parent=11 // pred_region
        _
      $region72: #{tpu_custom_call.1} parent=11 // pred_fallthru
        _
      // Predicated region
      $region73: #{tpu_custom_call.1} parent=11 // pred_check
        %p509 = pneg %p400
      $region74: #{tpu_custom_call.1} parent=11 // pred_check_branch
        %511 = sbr.rel (%p509) target = $region76
      $region75: #{tpu_custom_call.1} parent=11 // pred_region
        _
      $region76: #{tpu_custom_call.1} parent=11 // pred_fallthru
        _
      // Predicated region
      $region77: #{tpu_custom_call.1} parent=11 // pred_check
        %p512 = pneg %p421
      $region78: #{tpu_custom_call.1} parent=11 // pred_check_branch
        %514 = sbr.rel (%p512) target = $region80
      $region79: #{tpu_custom_call.1} parent=11 // pred_region
        _
      $region80: #{tpu_custom_call.1} parent=11 // pred_fallthru
        _
    $region12: #{tpu_custom_call.1} parent=5 // pred_fallthru
      _
    %p515 = scmp.lt.s32.totalorder %s24, 2
    // Predicated region
    $region81: #{tpu_custom_call.1} parent=5 // pred_check
      %p516 = pneg %p515
    $region82: #{tpu_custom_call.1} parent=5 // pred_check_branch
      %518 = sbr.rel (%p516) target = $region84
    $region83: #{tpu_custom_call.1} parent=5 // pred_region
      // Predicated region
      $region85: #{tpu_custom_call.1} parent=83 // pred_check
        %p519 = pneg %p58
      $region86: #{tpu_custom_call.1} parent=83 // pred_check_branch
        %521 = sbr.rel (%p519) target = $region88
      $region87: #{tpu_custom_call.1} parent=83 // pred_region
        %p522 = scmp.lt.s32.totalorder %s31, 1
        %s523 = scalar_select %p522, %s31, 1
        %p524 = scmp.lt.s32.totalorder %s32, 0
        %s525 = scalar_select %p524, %s32, 0
        %s526 = smul.addr %s523, 3
        %s527 = sadd.s32 %s525, %s526
        %s528 = smul.addr %s527, 8
        %s529 = scalar_lea.vmem %s0, %s528
      $region88: #{tpu_custom_call.1} parent=83 // pred_fallthru
        _
    $region84: #{tpu_custom_call.1} parent=5 // pred_fallthru
      _
    %p530 = scmp.le.s32.totalorder 1, %s24
    %p531 = scmp.lt.s32.totalorder %s24, 3
    %p532 = pnand %p530, %p531
    %p533 = pneg %p532
    // Predicated region
    $region89: #{tpu_custom_call.1} parent=5 // pred_check
      _
    $region90: #{tpu_custom_call.1} parent=5 // pred_check_branch
      %535 = sbr.rel (%p532) target = $region92
    $region91: #{tpu_custom_call.1} parent=5 // pred_region
      %s536 = ssub.s32 %s24, 1
      %p537 = scmp.lt.s32.totalorder %s33, 1
      %s538 = scalar_select %p537, %s33, 1
      %p539 = scmp.lt.s32.totalorder %s34, 0
      %s540 = scalar_select %p539, %s34, 0
      %s541 = smul.addr %s538, 3
      %s542 = sadd.s32 %s540, %s541
      %s543 = smul.addr %s542, 8
      %s544 = scalar_lea.vmem %s0, %s543
      %p545 = pneg %p64
      %p546 = pneg %p61
      %p547 = pneg %p85
      %p548 = pneg %p82
      %p549 = pneg %p106
      %p550 = pneg %p103
      %p551 = pneg %p127
      %p552 = pneg %p124
      %p553 = pneg %p148
      %p554 = pneg %p145
      %p555 = pneg %p169
      %p556 = pneg %p166
      %p557 = pneg %p190
      %p558 = pneg %p187
      %p559 = pneg %p211
      %p560 = pneg %p208
      %p561 = pneg %p232
      %p562 = pneg %p229
      %p563 = pneg %p253
      %p564 = pneg %p250
      %p565 = pneg %p274
      %p566 = pneg %p271
      %p567 = pneg %p295
      %p568 = pneg %p292
      %p569 = pneg %p316
      %p570 = pneg %p313
      %p571 = pneg %p337
      %p572 = pneg %p334
      %p573 = pneg %p358
      %p574 = pneg %p355
      %p575 = pneg %p379
      %p576 = pneg %p376
      %p577 = pneg %p400
      %p578 = pneg %p397
      %p579 = pneg %p421
      %p580 = pneg %p418
      %p581 = pneg %p449
      %p582 = pneg %p446
      %p583 = scmp.lt.s32.totalorder %s33, 1
      %s584 = scalar_select %p583, %s33, 1
      %p585 = scmp.lt.s32.totalorder %s34, 0
      %s586 = scalar_select %p585, %s34, 0
      %s587 = smul.addr %s584, 17
      %s588 = sadd.s32 %s586, %s587
      %s589 = smul.addr %s588, 8
      %s590 = scalar_lea.vmem %s18, %s589
      %p591 = scmp.lt.s32.totalorder %s33, 1
      %s592 = scalar_select %p591, %s33, 1
      %p593 = scmp.lt.s32.totalorder %s34, 0
      %s594 = scalar_select %p593, %s34, 0
      %s595 = smul.addr %s592, 3
      %s596 = sadd.s32 %s594, %s595
      %s597 = smul.addr %s596, 8
      %s598 = scalar_lea.vmem %s0, %s597
      %p599 = scmp.lt.s32.totalorder %s33, 1
      %s600 = scalar_select %p599, %s33, 1
      %p601 = scmp.lt.s32.totalorder %s34, 0
      %s602 = scalar_select %p601, %s34, 0
      %s603 = smul.addr %s600, 17
      %s604 = sadd.s32 %s602, %s603
      %s605 = smul.addr %s604, 8
      %s606 = scalar_lea.vmem %s18, %s605
      %v607 = vld [vmem:[%s598] sm:$0xff]
      %v608 = vld [vmem:[%s598 + $0x8] sm:$0xff]
      %v609 = vld [vmem:[%s598 + $0x10] sm:$0x1f]
      %v610 = vld [vmem:[%s1] sm:$0xff]
      %v611 = vld [vmem:[%s1 + $0x8] sm:$0xff]
      %v612 = vld [vmem:[%s1 + $0x10] sm:$0xff]
      %v613 = vld [vmem:[%s1 + $0x18] sm:$0xff]
      %v614 = vld [vmem:[%s1 + $0x20] sm:$0xff]
      %v615 = vld [vmem:[%s1 + $0x28] sm:$0xff]
      %v616 = vld [vmem:[%s1 + $0x30] sm:$0xff]
      %v617 = vld [vmem:[%s1 + $0x38] sm:$0xff]
      %v618 = vld [vmem:[%s1 + $0x40] sm:$0xff]
      %v619 = vld [vmem:[%s1 + $0x48] sm:$0xff]
      %v620 = vld [vmem:[%s1 + $0x50] sm:$0xff]
      %v621 = vld [vmem:[%s1 + $0x58] sm:$0xff]
      %v622 = vld [vmem:[%s2] sm:$0xff]
      %v623 = vld [vmem:[%s2 + $0x8] sm:$0xff]
      %v624 = vld [vmem:[%s2 + $0x10] sm:$0xff]
      %v625 = vld [vmem:[%s2 + $0x18] sm:$0xff]
      %v626 = vld [vmem:[%s2 + $0x20] sm:$0xff]
      %v627 = vld [vmem:[%s2 + $0x28] sm:$0xff]
      %v628 = vld [vmem:[%s2 + $0x30] sm:$0xff]
      %v629 = vld [vmem:[%s2 + $0x38] sm:$0xff]
      %v630 = vld [vmem:[%s2 + $0x40] sm:$0xff]
      %v631 = vld [vmem:[%s2 + $0x48] sm:$0xff]
      %v632 = vld [vmem:[%s2 + $0x50] sm:$0xff]
      %v633 = vld [vmem:[%s2 + $0x58] sm:$0xff]
      %635 = vset.pattern.permute.xlu0 0
      %636 = vperm.xlu0 %635, %v622
      %v637 = vpop.permute.xlu0 %636
      %640 = vset.pattern.permute.xlu0 0
      %641 = vperm.xlu0 %640, %v623
      %v642 = vpop.permute.xlu0 %641
      %645 = vset.pattern.permute.xlu0 0
      %646 = vperm.xlu0 %645, %v624
      %v647 = vpop.permute.xlu0 %646
      %650 = vset.pattern.permute.xlu0 0
      %651 = vperm.xlu0 %650, %v625
      %v652 = vpop.permute.xlu0 %651
      %655 = vset.pattern.permute.xlu0 0
      %656 = vperm.xlu0 %655, %v626
      %v657 = vpop.permute.xlu0 %656
      %660 = vset.pattern.permute.xlu0 0
      %661 = vperm.xlu0 %660, %v627
      %v662 = vpop.permute.xlu0 %661
      %665 = vset.pattern.permute.xlu0 0
      %666 = vperm.xlu0 %665, %v628
      %v667 = vpop.permute.xlu0 %666
      %670 = vset.pattern.permute.xlu0 0
      %671 = vperm.xlu0 %670, %v629
      %v672 = vpop.permute.xlu0 %671
      %675 = vset.pattern.permute.xlu0 0
      %676 = vperm.xlu0 %675, %v630
      %v677 = vpop.permute.xlu0 %676
      %680 = vset.pattern.permute.xlu0 0
      %681 = vperm.xlu0 %680, %v631
      %v682 = vpop.permute.xlu0 %681
      %685 = vset.pattern.permute.xlu0 0
      %686 = vperm.xlu0 %685, %v632
      %v687 = vpop.permute.xlu0 %686
      %690 = vset.pattern.permute.xlu0 0
      %691 = vperm.xlu0 %690, %v633
      %v692 = vpop.permute.xlu0 %691
      %vm694 = vcmask 171008
      %v696 = vsel %vm694, %v610, 0
      %v699 = vsel %vm694, %v611, 0
      %v702 = vsel %vm694, %v612, 0
      %v705 = vsel %vm694, %v613, 0
      %v708 = vsel %vm694, %v614, 0
      %v711 = vsel %vm694, %v615, 0
      %v714 = vsel %vm694, %v616, 0
      %v717 = vsel %vm694, %v617, 0
      %v720 = vsel %vm694, %v618, 0
      %v723 = vsel %vm694, %v619, 0
      %v726 = vsel %vm694, %v620, 0
      %v729 = vsel %vm694, %v621, 0
      %vm731 = vcmask 1044480
      %v733 = vsel %vm731, %v609, 0
      %735 = vmatpush.msra.mxu0 0.0
      %736 = vmatpush.msra.mxu0 0.0
      %737 = vmatpush.msra.mxu0 0.0
      %738 = vmatpush.msra.mxu0 0.0
      %739 = vmatpush.msra.mxu0 0.0
      %740 = vmatpush.msra.mxu0 0.0
      %741 = vmatpush.msra.mxu0 0.0
      %742 = vmatpush.msra.mxu0 0.0
      %743 = vmatpush.msra.mxu0 0.0
      %744 = vmatpush.msra.mxu0 0.0
      %745 = vmatpush.msra.mxu0 0.0
      %746 = vmatpush.msra.mxu0 0.0
      %747 = vmatpush.msra.mxu0 0.0
      %748 = vmatpush.msra.mxu0 %v733
      %749 = vmatpush.msra.mxu0 %v608
      %750 = vmatpush.msra.mxu0 %v607
      %751 = vmatmul.f32.gmra.mxu0 %v696
      %v752 = vpop.f32.mrf.mxu0
      %v753 = vadd.f32 %v637, %v752
      %754 = vmatmul.f32.gmra.mxu0 %v699
      %v755 = vpop.f32.mrf.mxu0
      %v756 = vadd.f32 %v642, %v755
      %757 = vmatmul.f32.gmra.mxu0 %v702
      %v758 = vpop.f32.mrf.mxu0
      %v759 = vadd.f32 %v647, %v758
      %760 = vmatmul.f32.gmra.mxu0 %v705
      %v761 = vpop.f32.mrf.mxu0
      %v762 = vadd.f32 %v652, %v761
      %763 = vmatmul.f32.gmra.mxu0 %v708
      %v764 = vpop.f32.mrf.mxu0
      %v765 = vadd.f32 %v657, %v764
      %766 = vmatmul.f32.gmra.mxu0 %v711
      %v767 = vpop.f32.mrf.mxu0
      %v768 = vadd.f32 %v662, %v767
      %769 = vmatmul.f32.gmra.mxu0 %v714
      %v770 = vpop.f32.mrf.mxu0
      %v771 = vadd.f32 %v667, %v770
      %772 = vmatmul.f32.gmra.mxu0 %v717
      %v773 = vpop.f32.mrf.mxu0
      %v774 = vadd.f32 %v672, %v773
      %775 = vmatmul.f32.gmra.mxu0 %v720
      %v776 = vpop.f32.mrf.mxu0
      %v777 = vadd.f32 %v677, %v776
      %778 = vmatmul.f32.gmra.mxu0 %v723
      %v779 = vpop.f32.mrf.mxu0
      %v780 = vadd.f32 %v682, %v779
      %781 = vmatmul.f32.gmra.mxu0 %v726
      %v782 = vpop.f32.mrf.mxu0
      %v783 = vadd.f32 %v687, %v782
      %784 = vmatmul.f32.gmra.mxu0 %v729
      %v785 = vpop.f32.mrf.mxu0
      %v786 = vadd.f32 %v692, %v785
      %787 = vdwg.mxu0
      %v788 = vmax.f32 %v753, 0.0
      %v789 = vmax.f32 %v756, 0.0
      %v790 = vmax.f32 %v759, 0.0
      %v791 = vmax.f32 %v762, 0.0
      %v792 = vmax.f32 %v765, 0.0
      %v793 = vmax.f32 %v768, 0.0
      %v794 = vmax.f32 %v771, 0.0
      %v795 = vmax.f32 %v774, 0.0
      %v796 = vmax.f32 %v777, 0.0
      %v797 = vmax.f32 %v780, 0.0
      %v798 = vmax.f32 %v783, 0.0
      %v799 = vmax.f32 %v786, 0.0
      %v800 = vld [vmem:[%s3] sm:$0xff]
      %v801 = vld [vmem:[%s3 + $0x8] sm:$0xff]
      %v802 = vld [vmem:[%s3 + $0x10] sm:$0xff]
      %v803 = vld [vmem:[%s3 + $0x18] sm:$0xff]
      %v804 = vld [vmem:[%s3 + $0x20] sm:$0xff]
      %v805 = vld [vmem:[%s3 + $0x28] sm:$0xff]
      %v806 = vld [vmem:[%s3 + $0x30] sm:$0xff]
      %v807 = vld [vmem:[%s3 + $0x38] sm:$0xff]
      %v808 = vld [vmem:[%s3 + $0x40] sm:$0xff]
      %v809 = vld [vmem:[%s3 + $0x48] sm:$0xff]
      %v810 = vld [vmem:[%s3 + $0x50] sm:$0xff]
      %v811 = vld [vmem:[%s3 + $0x58] sm:$0xff]
      %v812 = vld [vmem:[%s4] sm:$0xff]
      %v813 = vld [vmem:[%s4 + $0x8] sm:$0xff]
      %v814 = vld [vmem:[%s4 + $0x10] sm:$0xff]
      %v815 = vld [vmem:[%s4 + $0x18] sm:$0xff]
      %v816 = vld [vmem:[%s4 + $0x20] sm:$0xff]
      %v817 = vld [vmem:[%s4 + $0x28] sm:$0xff]
      %v818 = vld [vmem:[%s4 + $0x30] sm:$0xff]
      %v819 = vld [vmem:[%s4 + $0x38] sm:$0xff]
      %v820 = vld [vmem:[%s4 + $0x40] sm:$0xff]
      %v821 = vld [vmem:[%s4 + $0x48] sm:$0xff]
      %v822 = vld [vmem:[%s4 + $0x50] sm:$0xff]
      %v823 = vld [vmem:[%s4 + $0x58] sm:$0xff]
      %825 = vset.pattern.permute.xlu0 0
      %826 = vperm.xlu0 %825, %v812
      %v827 = vpop.permute.xlu0 %826
      %830 = vset.pattern.permute.xlu0 0
      %831 = vperm.xlu0 %830, %v813
      %v832 = vpop.permute.xlu0 %831
      %835 = vset.pattern.permute.xlu0 0
      %836 = vperm.xlu0 %835, %v814
      %v837 = vpop.permute.xlu0 %836
      %840 = vset.pattern.permute.xlu0 0
      %841 = vperm.xlu0 %840, %v815
      %v842 = vpop.permute.xlu0 %841
      %845 = vset.pattern.permute.xlu0 0
      %846 = vperm.xlu0 %845, %v816
      %v847 = vpop.permute.xlu0 %846
      %850 = vset.pattern.permute.xlu0 0
      %851 = vperm.xlu0 %850, %v817
      %v852 = vpop.permute.xlu0 %851
      %855 = vset.pattern.permute.xlu0 0
      %856 = vperm.xlu0 %855, %v818
      %v857 = vpop.permute.xlu0 %856
      %860 = vset.pattern.permute.xlu0 0
      %861 = vperm.xlu0 %860, %v819
      %v862 = vpop.permute.xlu0 %861
      %865 = vset.pattern.permute.xlu0 0
      %866 = vperm.xlu0 %865, %v820
      %v867 = vpop.permute.xlu0 %866
      %870 = vset.pattern.permute.xlu0 0
      %871 = vperm.xlu0 %870, %v821
      %v872 = vpop.permute.xlu0 %871
      %875 = vset.pattern.permute.xlu0 0
      %876 = vperm.xlu0 %875, %v822
      %v877 = vpop.permute.xlu0 %876
      %880 = vset.pattern.permute.xlu0 0
      %881 = vperm.xlu0 %880, %v823
      %v882 = vpop.permute.xlu0 %881
      %vm884 = vcmask 785408
      %v886 = vsel %vm884, %v800, 0
      %v889 = vsel %vm884, %v801, 0
      %v892 = vsel %vm884, %v802, 0
      %v895 = vsel %vm884, %v803, 0
      %v898 = vsel %vm884, %v804, 0
      %v901 = vsel %vm884, %v805, 0
      %v904 = vsel %vm884, %v806, 0
      %v907 = vsel %vm884, %v807, 0
      %v910 = vsel %vm884, %v808, 0
      %v913 = vsel %vm884, %v809, 0
      %v916 = vsel %vm884, %v810, 0
      %v919 = vsel %vm884, %v811, 0
      %921 = vmatpush.msra.mxu0 0.0
      %922 = vmatpush.msra.mxu0 0.0
      %923 = vmatpush.msra.mxu0 0.0
      %924 = vmatpush.msra.mxu0 0.0
      %925 = vmatpush.msra.mxu0 %v799
      %926 = vmatpush.msra.mxu0 %v798
      %927 = vmatpush.msra.mxu0 %v797
      %928 = vmatpush.msra.mxu0 %v796
      %929 = vmatpush.msra.mxu0 %v795
      %930 = vmatpush.msra.mxu0 %v794
      %931 = vmatpush.msra.mxu0 %v793
      %932 = vmatpush.msra.mxu0 %v792
      %933 = vmatpush.msra.mxu0 %v791
      %934 = vmatpush.msra.mxu0 %v790
      %935 = vmatpush.msra.mxu0 %v789
      %936 = vmatpush.msra.mxu0 %v788
      %937 = vmatmul.f32.gmra.mxu0 %v886
      %v938 = vpop.f32.mrf.mxu0
      %v939 = vadd.f32 %v827, %v938
      %940 = vmatmul.f32.gmra.mxu0 %v889
      %v941 = vpop.f32.mrf.mxu0
      %v942 = vadd.f32 %v832, %v941
      %943 = vmatmul.f32.gmra.mxu0 %v892
      %v944 = vpop.f32.mrf.mxu0
      %v945 = vadd.f32 %v837, %v944
      %946 = vmatmul.f32.gmra.mxu0 %v895
      %v947 = vpop.f32.mrf.mxu0
      %v948 = vadd.f32 %v842, %v947
      %949 = vmatmul.f32.gmra.mxu0 %v898
      %v950 = vpop.f32.mrf.mxu0
      %v951 = vadd.f32 %v847, %v950
      %952 = vmatmul.f32.gmra.mxu0 %v901
      %v953 = vpop.f32.mrf.mxu0
      %v954 = vadd.f32 %v852, %v953
      %955 = vmatmul.f32.gmra.mxu0 %v904
      %v956 = vpop.f32.mrf.mxu0
      %v957 = vadd.f32 %v857, %v956
      %958 = vmatmul.f32.gmra.mxu0 %v907
      %v959 = vpop.f32.mrf.mxu0
      %v960 = vadd.f32 %v862, %v959
      %961 = vmatmul.f32.gmra.mxu0 %v910
      %v962 = vpop.f32.mrf.mxu0
      %v963 = vadd.f32 %v867, %v962
      %964 = vmatmul.f32.gmra.mxu0 %v913
      %v965 = vpop.f32.mrf.mxu0
      %v966 = vadd.f32 %v872, %v965
      %967 = vmatmul.f32.gmra.mxu0 %v916
      %v968 = vpop.f32.mrf.mxu0
      %v969 = vadd.f32 %v877, %v968
      %970 = vmatmul.f32.gmra.mxu0 %v919
      %v971 = vpop.f32.mrf.mxu0
      %v972 = vadd.f32 %v882, %v971
      %973 = vdwg.mxu0
      %v974 = vmax.f32 %v939, 0.0
      %v975 = vmax.f32 %v942, 0.0
      %v976 = vmax.f32 %v945, 0.0
      %v977 = vmax.f32 %v948, 0.0
      %v978 = vmax.f32 %v951, 0.0
      %v979 = vmax.f32 %v954, 0.0
      %v980 = vmax.f32 %v957, 0.0
      %v981 = vmax.f32 %v960, 0.0
      %v982 = vmax.f32 %v963, 0.0
      %v983 = vmax.f32 %v966, 0.0
      %v984 = vmax.f32 %v969, 0.0
      %v985 = vmax.f32 %v972, 0.0
      %v986 = vld [vmem:[%s5] sm:$0xff]
      %v987 = vld [vmem:[%s5 + $0x8] sm:$0xff]
      %v988 = vld [vmem:[%s5 + $0x10] sm:$0xff]
      %v989 = vld [vmem:[%s5 + $0x18] sm:$0xff]
      %v990 = vld [vmem:[%s5 + $0x20] sm:$0xff]
      %v991 = vld [vmem:[%s5 + $0x28] sm:$0xff]
      %v992 = vld [vmem:[%s5 + $0x30] sm:$0xff]
      %v993 = vld [vmem:[%s5 + $0x38] sm:$0xff]
      %v994 = vld [vmem:[%s6] sm:$0xff]
      %v995 = vld [vmem:[%s6 + $0x8] sm:$0xff]
      %v996 = vld [vmem:[%s6 + $0x10] sm:$0xff]
      %v997 = vld [vmem:[%s6 + $0x18] sm:$0xff]
      %v998 = vld [vmem:[%s6 + $0x20] sm:$0xff]
      %v999 = vld [vmem:[%s6 + $0x28] sm:$0xff]
      %v1000 = vld [vmem:[%s6 + $0x30] sm:$0xff]
      %v1001 = vld [vmem:[%s6 + $0x38] sm:$0xff]
      %1003 = vset.pattern.permute.xlu0 0
      %1004 = vperm.xlu0 %1003, %v994
      %v1005 = vpop.permute.xlu0 %1004
      %1008 = vset.pattern.permute.xlu0 0
      %1009 = vperm.xlu0 %1008, %v995
      %v1010 = vpop.permute.xlu0 %1009
      %1013 = vset.pattern.permute.xlu0 0
      %1014 = vperm.xlu0 %1013, %v996
      %v1015 = vpop.permute.xlu0 %1014
      %1018 = vset.pattern.permute.xlu0 0
      %1019 = vperm.xlu0 %1018, %v997
      %v1020 = vpop.permute.xlu0 %1019
      %1023 = vset.pattern.permute.xlu0 0
      %1024 = vperm.xlu0 %1023, %v998
      %v1025 = vpop.permute.xlu0 %1024
      %1028 = vset.pattern.permute.xlu0 0
      %1029 = vperm.xlu0 %1028, %v999
      %v1030 = vpop.permute.xlu0 %1029
      %1033 = vset.pattern.permute.xlu0 0
      %1034 = vperm.xlu0 %1033, %v1000
      %v1035 = vpop.permute.xlu0 %1034
      %1038 = vset.pattern.permute.xlu0 0
      %1039 = vperm.xlu0 %1038, %v1001
      %v1040 = vpop.permute.xlu0 %1039
      %v1043 = vsel %vm884, %v986, 0
      %v1046 = vsel %vm884, %v987, 0
      %v1049 = vsel %vm884, %v988, 0
      %v1052 = vsel %vm884, %v989, 0
      %v1055 = vsel %vm884, %v990, 0
      %v1058 = vsel %vm884, %v991, 0
      %v1061 = vsel %vm884, %v992, 0
      %v1064 = vsel %vm884, %v993, 0
      %1066 = vmatpush.msra.mxu0 0.0
      %1067 = vmatpush.msra.mxu0 0.0
      %1068 = vmatpush.msra.mxu0 0.0
      %1069 = vmatpush.msra.mxu0 0.0
      %1070 = vmatpush.msra.mxu0 %v985
      %1071 = vmatpush.msra.mxu0 %v984
      %1072 = vmatpush.msra.mxu0 %v983
      %1073 = vmatpush.msra.mxu0 %v982
      %1074 = vmatpush.msra.mxu0 %v981
      %1075 = vmatpush.msra.mxu0 %v980
      %1076 = vmatpush.msra.mxu0 %v979
      %1077 = vmatpush.msra.mxu0 %v978
      %1078 = vmatpush.msra.mxu0 %v977
      %1079 = vmatpush.msra.mxu0 %v976
      %1080 = vmatpush.msra.mxu0 %v975
      %1081 = vmatpush.msra.mxu0 %v974
      %1082 = vmatmul.f32.gmra.mxu0 %v1043
      %v1083 = vpop.f32.mrf.mxu0
      %v1084 = vadd.f32 %v1005, %v1083
      %1085 = vmatmul.f32.gmra.mxu0 %v1046
      %v1086 = vpop.f32.mrf.mxu0
      %v1087 = vadd.f32 %v1010, %v1086
      %1088 = vmatmul.f32.gmra.mxu0 %v1049
      %v1089 = vpop.f32.mrf.mxu0
      %v1090 = vadd.f32 %v1015, %v1089
      %1091 = vmatmul.f32.gmra.mxu0 %v1052
      %v1092 = vpop.f32.mrf.mxu0
      %v1093 = vadd.f32 %v1020, %v1092
      %1094 = vmatmul.f32.gmra.mxu0 %v1055
      %v1095 = vpop.f32.mrf.mxu0
      %v1096 = vadd.f32 %v1025, %v1095
      %1097 = vmatmul.f32.gmra.mxu0 %v1058
      %v1098 = vpop.f32.mrf.mxu0
      %v1099 = vadd.f32 %v1030, %v1098
      %1100 = vmatmul.f32.gmra.mxu0 %v1061
      %v1101 = vpop.f32.mrf.mxu0
      %v1102 = vadd.f32 %v1035, %v1101
      %1103 = vmatmul.f32.gmra.mxu0 %v1064
      %v1104 = vpop.f32.mrf.mxu0
      %v1105 = vadd.f32 %v1040, %v1104
      %1106 = vdwg.mxu0
      %v1107 = vmax.f32 %v1084, 0.0
      %v1108 = vmax.f32 %v1087, 0.0
      %v1109 = vmax.f32 %v1090, 0.0
      %v1110 = vmax.f32 %v1093, 0.0
      %v1111 = vmax.f32 %v1096, 0.0
      %v1112 = vmax.f32 %v1099, 0.0
      %v1113 = vmax.f32 %v1102, 0.0
      %v1114 = vmax.f32 %v1105, 0.0
      %v1115 = vld [vmem:[%s7] sm:$0xff]
      %v1116 = vld [vmem:[%s7 + $0x8] sm:$0xff]
      %v1117 = vld [vmem:[%s7 + $0x10] sm:$0xff]
      %v1118 = vld [vmem:[%s7 + $0x18] sm:$0xff]
      %v1119 = vld [vmem:[%s7 + $0x20] sm:$0xff]
      %v1120 = vld [vmem:[%s7 + $0x28] sm:$0xff]
      %v1121 = vld [vmem:[%s7 + $0x30] sm:$0xff]
      %v1122 = vld [vmem:[%s7 + $0x38] sm:$0xff]
      %v1123 = vld [vmem:[%s8] sm:$0xff]
      %v1124 = vld [vmem:[%s8 + $0x8] sm:$0xff]
      %v1125 = vld [vmem:[%s8 + $0x10] sm:$0xff]
      %v1126 = vld [vmem:[%s8 + $0x18] sm:$0xff]
      %v1127 = vld [vmem:[%s8 + $0x20] sm:$0xff]
      %v1128 = vld [vmem:[%s8 + $0x28] sm:$0xff]
      %v1129 = vld [vmem:[%s8 + $0x30] sm:$0xff]
      %v1130 = vld [vmem:[%s8 + $0x38] sm:$0xff]
      %1132 = vset.pattern.permute.xlu0 0
      %1133 = vperm.xlu0 %1132, %v1123
      %v1134 = vpop.permute.xlu0 %1133
      %1137 = vset.pattern.permute.xlu0 0
      %1138 = vperm.xlu0 %1137, %v1124
      %v1139 = vpop.permute.xlu0 %1138
      %1142 = vset.pattern.permute.xlu0 0
      %1143 = vperm.xlu0 %1142, %v1125
      %v1144 = vpop.permute.xlu0 %1143
      %1147 = vset.pattern.permute.xlu0 0
      %1148 = vperm.xlu0 %1147, %v1126
      %v1149 = vpop.permute.xlu0 %1148
      %1152 = vset.pattern.permute.xlu0 0
      %1153 = vperm.xlu0 %1152, %v1127
      %v1154 = vpop.permute.xlu0 %1153
      %1157 = vset.pattern.permute.xlu0 0
      %1158 = vperm.xlu0 %1157, %v1128
      %v1159 = vpop.permute.xlu0 %1158
      %1162 = vset.pattern.permute.xlu0 0
      %1163 = vperm.xlu0 %1162, %v1129
      %v1164 = vpop.permute.xlu0 %1163
      %1167 = vset.pattern.permute.xlu0 0
      %1168 = vperm.xlu0 %1167, %v1130
      %v1169 = vpop.permute.xlu0 %1168
      %vm1171 = vcmask 523264
      %v1173 = vsel %vm1171, %v1115, 0
      %v1176 = vsel %vm1171, %v1116, 0
      %v1179 = vsel %vm1171, %v1117, 0
      %v1182 = vsel %vm1171, %v1118, 0
      %v1185 = vsel %vm1171, %v1119, 0
      %v1188 = vsel %vm1171, %v1120, 0
      %v1191 = vsel %vm1171, %v1121, 0
      %v1194 = vsel %vm1171, %v1122, 0
      %1196 = vmatpush.msra.mxu0 0.0
      %1197 = vmatpush.msra.mxu0 0.0
      %1198 = vmatpush.msra.mxu0 0.0
      %1199 = vmatpush.msra.mxu0 0.0
      %1200 = vmatpush.msra.mxu0 0.0
      %1201 = vmatpush.msra.mxu0 0.0
      %1202 = vmatpush.msra.mxu0 0.0
      %1203 = vmatpush.msra.mxu0 0.0
      %1204 = vmatpush.msra.mxu0 %v1114
      %1205 = vmatpush.msra.mxu0 %v1113
      %1206 = vmatpush.msra.mxu0 %v1112
      %1207 = vmatpush.msra.mxu0 %v1111
      %1208 = vmatpush.msra.mxu0 %v1110
      %1209 = vmatpush.msra.mxu0 %v1109
      %1210 = vmatpush.msra.mxu0 %v1108
      %1211 = vmatpush.msra.mxu0 %v1107
      %1212 = vmatmul.f32.gmra.mxu0 %v1173
      %v1213 = vpop.f32.mrf.mxu0
      %v1214 = vadd.f32 %v1134, %v1213
      %1215 = vmatmul.f32.gmra.mxu0 %v1176
      %v1216 = vpop.f32.mrf.mxu0
      %v1217 = vadd.f32 %v1139, %v1216
      %1218 = vmatmul.f32.gmra.mxu0 %v1179
      %v1219 = vpop.f32.mrf.mxu0
      %v1220 = vadd.f32 %v1144, %v1219
      %1221 = vmatmul.f32.gmra.mxu0 %v1182
      %v1222 = vpop.f32.mrf.mxu0
      %v1223 = vadd.f32 %v1149, %v1222
      %1224 = vmatmul.f32.gmra.mxu0 %v1185
      %v1225 = vpop.f32.mrf.mxu0
      %v1226 = vadd.f32 %v1154, %v1225
      %1227 = vmatmul.f32.gmra.mxu0 %v1188
      %v1228 = vpop.f32.mrf.mxu0
      %v1229 = vadd.f32 %v1159, %v1228
      %1230 = vmatmul.f32.gmra.mxu0 %v1191
      %v1231 = vpop.f32.mrf.mxu0
      %v1232 = vadd.f32 %v1164, %v1231
      %1233 = vmatmul.f32.gmra.mxu0 %v1194
      %v1234 = vpop.f32.mrf.mxu0
      %v1235 = vadd.f32 %v1169, %v1234
      %1236 = vdwg.mxu0
      %v1237 = vmax.f32 %v1214, 0.0
      %v1238 = vmax.f32 %v1217, 0.0
      %v1239 = vmax.f32 %v1220, 0.0
      %v1240 = vmax.f32 %v1223, 0.0
      %v1241 = vmax.f32 %v1226, 0.0
      %v1242 = vmax.f32 %v1229, 0.0
      %v1243 = vmax.f32 %v1232, 0.0
      %v1244 = vmax.f32 %v1235, 0.0
      %v1245 = vperm.slane %v608, 1
      %v1246 = vperm.slane %v608, 2
      %v1247 = vperm.slane %v608, 3
      %v1248 = vld [vmem:[%s9] sm:$0xff]
      %1250 = vset.pattern.permute.xlu0 0
      %1251 = vperm.xlu0 %1250, %v1248
      %v1252 = vpop.permute.xlu0 %1251
      %v1254 = vsub.f32 %v1245, %v1252
      %v1255 = vmul.f32 %v1254, %v1254
      %v1256 = vadd.f32 %v1255, 0.0
      %1257 = vset.pattern.permute.xlu0 4
      %1258 = vperm.xlu0 %1257, %v1248
      %v1259 = vpop.permute.xlu0 %1258
      %v1261 = vsub.f32 %v1246, %v1259
      %v1262 = vmul.f32 %v1261, %v1261
      %v1263 = vadd.f32 %v1256, %v1262
      %1264 = vset.pattern.permute.xlu0 8
      %1265 = vperm.xlu0 %1264, %v1248
      %v1266 = vpop.permute.xlu0 %1265
      %v1268 = vsub.f32 %v1247, %v1266
      %v1269 = vmul.f32 %v1268, %v1268
      %v1270 = vadd.f32 %v1263, %v1269
      %v1271 = vmul.f32 %v1270, -12.5
      %v1272 = vmul.f32 %v1271, 1.442695
      %v1273 = vpow.pop %v1272
      %v1274 = vadd.f32 %v1273, 0.0
      %1275 = vset.pattern.permute.xlu0 1
      %1276 = vperm.xlu0 %1275, %v1248
      %v1277 = vpop.permute.xlu0 %1276
      %v1279 = vsub.f32 %v1245, %v1277
      %v1280 = vmul.f32 %v1279, %v1279
      %v1281 = vadd.f32 %v1280, 0.0
      %1282 = vset.pattern.permute.xlu0 5
      %1283 = vperm.xlu0 %1282, %v1248
      %v1284 = vpop.permute.xlu0 %1283
      %v1286 = vsub.f32 %v1246, %v1284
      %v1287 = vmul.f32 %v1286, %v1286
      %v1288 = vadd.f32 %v1281, %v1287
      %1289 = vset.pattern.permute.xlu0 9
      %1290 = vperm.xlu0 %1289, %v1248
      %v1291 = vpop.permute.xlu0 %1290
      %v1293 = vsub.f32 %v1247, %v1291
      %v1294 = vmul.f32 %v1293, %v1293
      %v1295 = vadd.f32 %v1288, %v1294
      %v1296 = vmul.f32 %v1295, -12.5
      %v1297 = vmul.f32 %v1296, 1.442695
      %v1298 = vpow.pop %v1297
      %v1299 = vadd.f32 %v1274, %v1298
      %1300 = vset.pattern.permute.xlu0 2
      %1301 = vperm.xlu0 %1300, %v1248
      %v1302 = vpop.permute.xlu0 %1301
      %v1304 = vsub.f32 %v1245, %v1302
      %v1305 = vmul.f32 %v1304, %v1304
      %v1306 = vadd.f32 %v1305, 0.0
      %1307 = vset.pattern.permute.xlu0 6
      %1308 = vperm.xlu0 %1307, %v1248
      %v1309 = vpop.permute.xlu0 %1308
      %v1311 = vsub.f32 %v1246, %v1309
      %v1312 = vmul.f32 %v1311, %v1311
      %v1313 = vadd.f32 %v1306, %v1312
      %1314 = vset.pattern.permute.xlu0 10
      %1315 = vperm.xlu0 %1314, %v1248
      %v1316 = vpop.permute.xlu0 %1315
      %v1318 = vsub.f32 %v1247, %v1316
      %v1319 = vmul.f32 %v1318, %v1318
      %v1320 = vadd.f32 %v1313, %v1319
      %v1321 = vmul.f32 %v1320, -12.5
      %v1322 = vmul.f32 %v1321, 1.442695
      %v1323 = vpow.pop %v1322
      %v1324 = vadd.f32 %v1299, %v1323
      %1325 = vset.pattern.permute.xlu0 3
      %1326 = vperm.xlu0 %1325, %v1248
      %v1327 = vpop.permute.xlu0 %1326
      %v1329 = vsub.f32 %v1245, %v1327
      %v1330 = vmul.f32 %v1329, %v1329
      %v1331 = vadd.f32 %v1330, 0.0
      %1332 = vset.pattern.permute.xlu0 7
      %1333 = vperm.xlu0 %1332, %v1248
      %v1334 = vpop.permute.xlu0 %1333
      %v1336 = vsub.f32 %v1246, %v1334
      %v1337 = vmul.f32 %v1336, %v1336
      %v1338 = vadd.f32 %v1331, %v1337
      %1339 = vset.pattern.permute.xlu0 11
      %1340 = vperm.xlu0 %1339, %v1248
      %v1341 = vpop.permute.xlu0 %1340
      %v1343 = vsub.f32 %v1247, %v1341
      %v1344 = vmul.f32 %v1343, %v1343
      %v1345 = vadd.f32 %v1338, %v1344
      %v1346 = vmul.f32 %v1345, -12.5
      %v1347 = vmul.f32 %v1346, 1.442695
      %v1348 = vpow.pop %v1347
      %v1349 = vadd.f32 %v1324, %v1348
      %v1350 = vperm.slane %v608, 4
      %v1351 = vperm.slane %v608, 7
      %v1352 = vperm.slane %v609, 2
      %v1353 = vsub.f32 %v1350, %v1252
      %v1354 = vmul.f32 %v1353, %v1353
      %v1355 = vadd.f32 %v1354, 0.0
      %v1356 = vsub.f32 %v1351, %v1259
      %v1357 = vmul.f32 %v1356, %v1356
      %v1358 = vadd.f32 %v1355, %v1357
      %v1359 = vsub.f32 %v1352, %v1266
      %v1360 = vmul.f32 %v1359, %v1359
      %v1361 = vadd.f32 %v1358, %v1360
      %v1362 = vmul.f32 %v1361, -12.5
      %v1363 = vmul.f32 %v1362, 1.442695
      %v1364 = vpow.pop %v1363
      %v1365 = vadd.f32 %v1349, %v1364
      %v1366 = vsub.f32 %v1350, %v1277
      %v1367 = vmul.f32 %v1366, %v1366
      %v1368 = vadd.f32 %v1367, 0.0
      %v1369 = vsub.f32 %v1351, %v1284
      %v1370 = vmul.f32 %v1369, %v1369
      %v1371 = vadd.f32 %v1368, %v1370
      %v1372 = vsub.f32 %v1352, %v1291
      %v1373 = vmul.f32 %v1372, %v1372
      %v1374 = vadd.f32 %v1371, %v1373
      %v1375 = vmul.f32 %v1374, -12.5
      %v1376 = vmul.f32 %v1375, 1.442695
      %v1377 = vpow.pop %v1376
      %v1378 = vadd.f32 %v1365, %v1377
      %v1379 = vsub.f32 %v1350, %v1302
      %v1380 = vmul.f32 %v1379, %v1379
      %v1381 = vadd.f32 %v1380, 0.0
      %v1382 = vsub.f32 %v1351, %v1309
      %v1383 = vmul.f32 %v1382, %v1382
      %v1384 = vadd.f32 %v1381, %v1383
      %v1385 = vsub.f32 %v1352, %v1316
      %v1386 = vmul.f32 %v1385, %v1385
      %v1387 = vadd.f32 %v1384, %v1386
      %v1388 = vmul.f32 %v1387, -12.5
      %v1389 = vmul.f32 %v1388, 1.442695
      %v1390 = vpow.pop %v1389
      %v1391 = vadd.f32 %v1378, %v1390
      %v1392 = vsub.f32 %v1350, %v1327
      %v1393 = vmul.f32 %v1392, %v1392
      %v1394 = vadd.f32 %v1393, 0.0
      %v1395 = vsub.f32 %v1351, %v1334
      %v1396 = vmul.f32 %v1395, %v1395
      %v1397 = vadd.f32 %v1394, %v1396
      %v1398 = vsub.f32 %v1352, %v1341
      %v1399 = vmul.f32 %v1398, %v1398
      %v1400 = vadd.f32 %v1397, %v1399
      %v1401 = vmul.f32 %v1400, -12.5
      %v1402 = vmul.f32 %v1401, 1.442695
      %v1403 = vpow.pop %v1402
      %v1404 = vadd.f32 %v1391, %v1403
      %v1405 = vperm.slane %v608, 5
      %v1406 = vperm.slane %v609, 0
      %v1407 = vperm.slane %v609, 3
      %v1408 = vsub.f32 %v1405, %v1252
      %v1409 = vmul.f32 %v1408, %v1408
      %v1410 = vadd.f32 %v1409, 0.0
      %v1411 = vsub.f32 %v1406, %v1259
      %v1412 = vmul.f32 %v1411, %v1411
      %v1413 = vadd.f32 %v1410, %v1412
      %v1414 = vsub.f32 %v1407, %v1266
      %v1415 = vmul.f32 %v1414, %v1414
      %v1416 = vadd.f32 %v1413, %v1415
      %v1417 = vmul.f32 %v1416, -12.5
      %v1418 = vmul.f32 %v1417, 1.442695
      %v1419 = vpow.pop %v1418
      %v1420 = vadd.f32 %v1404, %v1419
      %v1421 = vsub.f32 %v1405, %v1277
      %v1422 = vmul.f32 %v1421, %v1421
      %v1423 = vadd.f32 %v1422, 0.0
      %v1424 = vsub.f32 %v1406, %v1284
      %v1425 = vmul.f32 %v1424, %v1424
      %v1426 = vadd.f32 %v1423, %v1425
      %v1427 = vsub.f32 %v1407, %v1291
      %v1428 = vmul.f32 %v1427, %v1427
      %v1429 = vadd.f32 %v1426, %v1428
      %v1430 = vmul.f32 %v1429, -12.5
      %v1431 = vmul.f32 %v1430, 1.442695
      %v1432 = vpow.pop %v1431
      %v1433 = vadd.f32 %v1420, %v1432
      %v1434 = vsub.f32 %v1405, %v1302
      %v1435 = vmul.f32 %v1434, %v1434
      %v1436 = vadd.f32 %v1435, 0.0
      %v1437 = vsub.f32 %v1406, %v1309
      %v1438 = vmul.f32 %v1437, %v1437
      %v1439 = vadd.f32 %v1436, %v1438
      %v1440 = vsub.f32 %v1407, %v1316
      %v1441 = vmul.f32 %v1440, %v1440
      %v1442 = vadd.f32 %v1439, %v1441
      %v1443 = vmul.f32 %v1442, -12.5
      %v1444 = vmul.f32 %v1443, 1.442695
      %v1445 = vpow.pop %v1444
      %v1446 = vadd.f32 %v1433, %v1445
      %v1447 = vsub.f32 %v1405, %v1327
      %v1448 = vmul.f32 %v1447, %v1447
      %v1449 = vadd.f32 %v1448, 0.0
      %v1450 = vsub.f32 %v1406, %v1334
      %v1451 = vmul.f32 %v1450, %v1450
      %v1452 = vadd.f32 %v1449, %v1451
      %v1453 = vsub.f32 %v1407, %v1341
      %v1454 = vmul.f32 %v1453, %v1453
      %v1455 = vadd.f32 %v1452, %v1454
      %v1456 = vmul.f32 %v1455, -12.5
      %v1457 = vmul.f32 %v1456, 1.442695
      %v1458 = vpow.pop %v1457
      %v1459 = vadd.f32 %v1446, %v1458
      %v1460 = vperm.slane %v608, 6
      %v1461 = vperm.slane %v609, 1
      %v1462 = vperm.slane %v609, 4
      %v1463 = vsub.f32 %v1460, %v1252
      %v1464 = vmul.f32 %v1463, %v1463
      %v1465 = vadd.f32 %v1464, 0.0
      %v1466 = vsub.f32 %v1461, %v1259
      %v1467 = vmul.f32 %v1466, %v1466
      %v1468 = vadd.f32 %v1465, %v1467
      %v1469 = vsub.f32 %v1462, %v1266
      %v1470 = vmul.f32 %v1469, %v1469
      %v1471 = vadd.f32 %v1468, %v1470
      %v1472 = vmul.f32 %v1471, -12.5
      %v1473 = vmul.f32 %v1472, 1.442695
      %v1474 = vpow.pop %v1473
      %v1475 = vadd.f32 %v1459, %v1474
      %v1476 = vsub.f32 %v1460, %v1277
      %v1477 = vmul.f32 %v1476, %v1476
      %v1478 = vadd.f32 %v1477, 0.0
      %v1479 = vsub.f32 %v1461, %v1284
      %v1480 = vmul.f32 %v1479, %v1479
      %v1481 = vadd.f32 %v1478, %v1480
      %v1482 = vsub.f32 %v1462, %v1291
      %v1483 = vmul.f32 %v1482, %v1482
      %v1484 = vadd.f32 %v1481, %v1483
      %v1485 = vmul.f32 %v1484, -12.5
      %v1486 = vmul.f32 %v1485, 1.442695
      %v1487 = vpow.pop %v1486
      %v1488 = vadd.f32 %v1475, %v1487
      %v1489 = vsub.f32 %v1460, %v1302
      %v1490 = vmul.f32 %v1489, %v1489
      %v1491 = vadd.f32 %v1490, 0.0
      %v1492 = vsub.f32 %v1461, %v1309
      %v1493 = vmul.f32 %v1492, %v1492
      %v1494 = vadd.f32 %v1491, %v1493
      %v1495 = vsub.f32 %v1462, %v1316
      %v1496 = vmul.f32 %v1495, %v1495
      %v1497 = vadd.f32 %v1494, %v1496
      %v1498 = vmul.f32 %v1497, -12.5
      %v1499 = vmul.f32 %v1498, 1.442695
      %v1500 = vpow.pop %v1499
      %v1501 = vadd.f32 %v1488, %v1500
      %v1502 = vsub.f32 %v1460, %v1327
      %v1503 = vmul.f32 %v1502, %v1502
      %v1504 = vadd.f32 %v1503, 0.0
      %v1505 = vsub.f32 %v1461, %v1334
      %v1506 = vmul.f32 %v1505, %v1505
      %v1507 = vadd.f32 %v1504, %v1506
      %v1508 = vsub.f32 %v1462, %v1341
      %v1509 = vmul.f32 %v1508, %v1508
      %v1510 = vadd.f32 %v1507, %v1509
      %v1511 = vmul.f32 %v1510, -12.5
      %v1512 = vmul.f32 %v1511, 1.442695
      %v1513 = vpow.pop %v1512
      %v1514 = vadd.f32 %v1501, %v1513
      %v1515 = vld [vmem:[%s10] sm:$0xff]
      %1517 = vset.pattern.permute.xlu0 0
      %1518 = vperm.xlu0 %1517, %v1515
      %v1519 = vpop.permute.xlu0 %1518
      %v1521 = vmul.f32 %v1514, %v1519
      %v1522 = vld [vmem:[%s11] sm:$0xff]
      %1524 = vset.pattern.permute.xlu0 0
      %1525 = vperm.xlu0 %1524, %v1522
      %v1526 = vpop.permute.xlu0 %1525
      %v1528 = vadd.f32 %v1521, %v1526
      %v1529 = vmax.f32 %v1528, 0.0
      %v1530 = vld [vmem:[%s12] sm:$0xff]
      %v1531 = vld [vmem:[%s12 + $0x8] sm:$0xff]
      %v1532 = vld [vmem:[%s12 + $0x10] sm:$0xff]
      %v1533 = vld [vmem:[%s12 + $0x18] sm:$0xff]
      %v1534 = vld [vmem:[%s12 + $0x20] sm:$0xff]
      %v1535 = vld [vmem:[%s12 + $0x28] sm:$0xff]
      %v1536 = vld [vmem:[%s12 + $0x30] sm:$0xff]
      %v1537 = vld [vmem:[%s12 + $0x38] sm:$0xff]
      %v1538 = vld [vmem:[%s12 + $0x40] sm:$0xff]
      %v1539 = vld [vmem:[%s12 + $0x48] sm:$0xff]
      %v1540 = vld [vmem:[%s12 + $0x50] sm:$0xff]
      %v1541 = vld [vmem:[%s12 + $0x58] sm:$0xff]
      %v1542 = vld [vmem:[%s12 + $0x60] sm:$0xff]
      %v1543 = vld [vmem:[%s12 + $0x68] sm:$0xff]
      %v1544 = vld [vmem:[%s12 + $0x70] sm:$0xff]
      %v1545 = vld [vmem:[%s12 + $0x78] sm:$0xff]
      %v1546 = vld [vmem:[%s12 + $0x80] sm:$0x7]
      %v1547 = vld [vmem:[%s13] sm:$0xff]
      %v1548 = vld [vmem:[%s13 + $0x8] sm:$0xff]
      %v1549 = vld [vmem:[%s13 + $0x10] sm:$0xff]
      %v1550 = vld [vmem:[%s13 + $0x18] sm:$0xff]
      %v1551 = vld [vmem:[%s13 + $0x20] sm:$0xff]
      %v1552 = vld [vmem:[%s13 + $0x28] sm:$0xff]
      %v1553 = vld [vmem:[%s13 + $0x30] sm:$0xff]
      %v1554 = vld [vmem:[%s13 + $0x38] sm:$0xff]
      %v1555 = vld [vmem:[%s13 + $0x40] sm:$0xff]
      %v1556 = vld [vmem:[%s13 + $0x48] sm:$0xff]
      %v1557 = vld [vmem:[%s13 + $0x50] sm:$0xff]
      %v1558 = vld [vmem:[%s13 + $0x58] sm:$0xff]
      %v1559 = vld [vmem:[%s13 + $0x60] sm:$0xff]
      %v1560 = vld [vmem:[%s13 + $0x68] sm:$0xff]
      %v1561 = vld [vmem:[%s13 + $0x70] sm:$0xff]
      %v1562 = vld [vmem:[%s13 + $0x78] sm:$0xff]
      %v1563 = vld [vmem:[%s13 + $0x80] sm:$0x7]
      %vm1564 = vcmask 64512
      %v1566 = vsel %vm1564, %v1547, 0
      %v1569 = vsel %vm1564, %v1548, 0
      %v1572 = vsel %vm1564, %v1549, 0
      %v1575 = vsel %vm1564, %v1550, 0
      %v1578 = vsel %vm1564, %v1551, 0
      %v1581 = vsel %vm1564, %v1552, 0
      %v1584 = vsel %vm1564, %v1553, 0
      %v1587 = vsel %vm1564, %v1554, 0
      %v1590 = vsel %vm1564, %v1555, 0
      %v1593 = vsel %vm1564, %v1556, 0
      %v1596 = vsel %vm1564, %v1557, 0
      %v1599 = vsel %vm1564, %v1558, 0
      %v1602 = vsel %vm1564, %v1559, 0
      %v1605 = vsel %vm1564, %v1560, 0
      %v1608 = vsel %vm1564, %v1561, 0
      %v1611 = vsel %vm1564, %v1562, 0
      %v1614 = vsel %vm1564, %v1563, 0
      %1616 = vmatpush.msra.mxu0 0.0
      %1617 = vmatpush.msra.mxu0 0.0
      %1618 = vmatpush.msra.mxu0 0.0
      %1619 = vmatpush.msra.mxu0 0.0
      %1620 = vmatpush.msra.mxu0 0.0
      %1621 = vmatpush.msra.mxu0 0.0
      %1622 = vmatpush.msra.mxu0 0.0
      %1623 = vmatpush.msra.mxu0 0.0
      %1624 = vmatpush.msra.mxu0 0.0
      %1625 = vmatpush.msra.mxu0 0.0
      %1626 = vmatpush.msra.mxu0 0.0
      %1627 = vmatpush.msra.mxu0 0.0
      %1628 = vmatpush.msra.mxu0 0.0
      %1629 = vmatpush.msra.mxu0 0.0
      %1630 = vmatpush.msra.mxu0 0.0
      %1631 = vmatpush.msra.mxu0 %v1529
      %1632 = vmatmul.f32.gmra.mxu0 %v1566
      %v1633 = vpop.f32.mrf.mxu0
      %v1634 = vadd.f32 0.0, %v1633
      %1635 = vmatmul.f32.gmra.mxu0 %v1569
      %v1636 = vpop.f32.mrf.mxu0
      %v1637 = vadd.f32 0.0, %v1636
      %1638 = vmatmul.f32.gmra.mxu0 %v1572
      %v1639 = vpop.f32.mrf.mxu0
      %v1640 = vadd.f32 0.0, %v1639
      %1641 = vmatmul.f32.gmra.mxu0 %v1575
      %v1642 = vpop.f32.mrf.mxu0
      %v1643 = vadd.f32 0.0, %v1642
      %1644 = vmatmul.f32.gmra.mxu0 %v1578
      %v1645 = vpop.f32.mrf.mxu0
      %v1646 = vadd.f32 0.0, %v1645
      %1647 = vmatmul.f32.gmra.mxu0 %v1581
      %v1648 = vpop.f32.mrf.mxu0
      %v1649 = vadd.f32 0.0, %v1648
      %1650 = vmatmul.f32.gmra.mxu0 %v1584
      %v1651 = vpop.f32.mrf.mxu0
      %v1652 = vadd.f32 0.0, %v1651
      %1653 = vmatmul.f32.gmra.mxu0 %v1587
      %v1654 = vpop.f32.mrf.mxu0
      %v1655 = vadd.f32 0.0, %v1654
      %1656 = vmatmul.f32.gmra.mxu0 %v1590
      %v1657 = vpop.f32.mrf.mxu0
      %v1658 = vadd.f32 0.0, %v1657
      %1659 = vmatmul.f32.gmra.mxu0 %v1593
      %v1660 = vpop.f32.mrf.mxu0
      %v1661 = vadd.f32 0.0, %v1660
      %1662 = vmatmul.f32.gmra.mxu0 %v1596
      %v1663 = vpop.f32.mrf.mxu0
      %v1664 = vadd.f32 0.0, %v1663
      %1665 = vmatmul.f32.gmra.mxu0 %v1599
      %v1666 = vpop.f32.mrf.mxu0
      %v1667 = vadd.f32 0.0, %v1666
      %1668 = vmatmul.f32.gmra.mxu0 %v1602
      %v1669 = vpop.f32.mrf.mxu0
      %v1670 = vadd.f32 0.0, %v1669
      %1671 = vmatmul.f32.gmra.mxu0 %v1605
      %v1672 = vpop.f32.mrf.mxu0
      %v1673 = vadd.f32 0.0, %v1672
      %1674 = vmatmul.f32.gmra.mxu0 %v1608
      %v1675 = vpop.f32.mrf.mxu0
      %v1676 = vadd.f32 0.0, %v1675
      %1677 = vmatmul.f32.gmra.mxu0 %v1611
      %v1678 = vpop.f32.mrf.mxu0
      %v1679 = vadd.f32 0.0, %v1678
      %1680 = vmatmul.f32.gmra.mxu0 %v1614
      %v1681 = vpop.f32.mrf.mxu0
      %v1682 = vadd.f32 0.0, %v1681
      %1683 = vdwg.mxu0
      %v1685 = vsel %vm1171, %v1530, 0
      %v1688 = vsel %vm1171, %v1531, 0
      %v1691 = vsel %vm1171, %v1532, 0
      %v1694 = vsel %vm1171, %v1533, 0
      %v1697 = vsel %vm1171, %v1534, 0
      %v1700 = vsel %vm1171, %v1535, 0
      %v1703 = vsel %vm1171, %v1536, 0
      %v1706 = vsel %vm1171, %v1537, 0
      %v1709 = vsel %vm1171, %v1538, 0
      %v1712 = vsel %vm1171, %v1539, 0
      %v1715 = vsel %vm1171, %v1540, 0
      %v1718 = vsel %vm1171, %v1541, 0
      %v1721 = vsel %vm1171, %v1542, 0
      %v1724 = vsel %vm1171, %v1543, 0
      %v1727 = vsel %vm1171, %v1544, 0
      %v1730 = vsel %vm1171, %v1545, 0
      %v1733 = vsel %vm1171, %v1546, 0
      %1735 = vmatpush.msra.mxu0 0.0
      %1736 = vmatpush.msra.mxu0 0.0
      %1737 = vmatpush.msra.mxu0 0.0
      %1738 = vmatpush.msra.mxu0 0.0
      %1739 = vmatpush.msra.mxu0 0.0
      %1740 = vmatpush.msra.mxu0 0.0
      %1741 = vmatpush.msra.mxu0 0.0
      %1742 = vmatpush.msra.mxu0 0.0
      %1743 = vmatpush.msra.mxu0 %v1244
      %1744 = vmatpush.msra.mxu0 %v1243
      %1745 = vmatpush.msra.mxu0 %v1242
      %1746 = vmatpush.msra.mxu0 %v1241
      %1747 = vmatpush.msra.mxu0 %v1240
      %1748 = vmatpush.msra.mxu0 %v1239
      %1749 = vmatpush.msra.mxu0 %v1238
      %1750 = vmatpush.msra.mxu0 %v1237
      %1751 = vmatmul.f32.gmra.mxu0 %v1685
      %v1752 = vpop.f32.mrf.mxu0
      %v1753 = vadd.f32 %v1634, %v1752
      %1754 = vmatmul.f32.gmra.mxu0 %v1688
      %v1755 = vpop.f32.mrf.mxu0
      %v1756 = vadd.f32 %v1637, %v1755
      %1757 = vmatmul.f32.gmra.mxu0 %v1691
      %v1758 = vpop.f32.mrf.mxu0
      %v1759 = vadd.f32 %v1640, %v1758
      %1760 = vmatmul.f32.gmra.mxu0 %v1694
      %v1761 = vpop.f32.mrf.mxu0
      %v1762 = vadd.f32 %v1643, %v1761
      %1763 = vmatmul.f32.gmra.mxu0 %v1697
      %v1764 = vpop.f32.mrf.mxu0
      %v1765 = vadd.f32 %v1646, %v1764
      %1766 = vmatmul.f32.gmra.mxu0 %v1700
      %v1767 = vpop.f32.mrf.mxu0
      %v1768 = vadd.f32 %v1649, %v1767
      %1769 = vmatmul.f32.gmra.mxu0 %v1703
      %v1770 = vpop.f32.mrf.mxu0
      %v1771 = vadd.f32 %v1652, %v1770
      %1772 = vmatmul.f32.gmra.mxu0 %v1706
      %v1773 = vpop.f32.mrf.mxu0
      %v1774 = vadd.f32 %v1655, %v1773
      %1775 = vmatmul.f32.gmra.mxu0 %v1709
      %v1776 = vpop.f32.mrf.mxu0
      %v1777 = vadd.f32 %v1658, %v1776
      %1778 = vmatmul.f32.gmra.mxu0 %v1712
      %v1779 = vpop.f32.mrf.mxu0
      %v1780 = vadd.f32 %v1661, %v1779
      %1781 = vmatmul.f32.gmra.mxu0 %v1715
      %v1782 = vpop.f32.mrf.mxu0
      %v1783 = vadd.f32 %v1664, %v1782
      %1784 = vmatmul.f32.gmra.mxu0 %v1718
      %v1785 = vpop.f32.mrf.mxu0
      %v1786 = vadd.f32 %v1667, %v1785
      %1787 = vmatmul.f32.gmra.mxu0 %v1721
      %v1788 = vpop.f32.mrf.mxu0
      %v1789 = vadd.f32 %v1670, %v1788
      %1790 = vmatmul.f32.gmra.mxu0 %v1724
      %v1791 = vpop.f32.mrf.mxu0
      %v1792 = vadd.f32 %v1673, %v1791
      %1793 = vmatmul.f32.gmra.mxu0 %v1727
      %v1794 = vpop.f32.mrf.mxu0
      %v1795 = vadd.f32 %v1676, %v1794
      %1796 = vmatmul.f32.gmra.mxu0 %v1730
      %v1797 = vpop.f32.mrf.mxu0
      %v1798 = vadd.f32 %v1679, %v1797
      %1799 = vmatmul.f32.gmra.mxu0 %v1733
      %v1800 = vpop.f32.mrf.mxu0
      %v1801 = vadd.f32 %v1682, %v1800
      %1802 = vdwg.mxu0
      %v1803 = vld [vmem:[%s14] sm:$0xff]
      %v1804 = vld [vmem:[%s14 + $0x8] sm:$0xff]
      %v1805 = vld [vmem:[%s14 + $0x10] sm:$0xff]
      %v1806 = vld [vmem:[%s14 + $0x18] sm:$0xff]
      %v1807 = vld [vmem:[%s14 + $0x20] sm:$0xff]
      %v1808 = vld [vmem:[%s14 + $0x28] sm:$0xff]
      %v1809 = vld [vmem:[%s14 + $0x30] sm:$0xff]
      %v1810 = vld [vmem:[%s14 + $0x38] sm:$0xff]
      %v1811 = vld [vmem:[%s14 + $0x40] sm:$0xff]
      %v1812 = vld [vmem:[%s14 + $0x48] sm:$0xff]
      %v1813 = vld [vmem:[%s14 + $0x50] sm:$0xff]
      %v1814 = vld [vmem:[%s14 + $0x58] sm:$0xff]
      %v1815 = vld [vmem:[%s14 + $0x60] sm:$0xff]
      %v1816 = vld [vmem:[%s14 + $0x68] sm:$0xff]
      %v1817 = vld [vmem:[%s14 + $0x70] sm:$0xff]
      %v1818 = vld [vmem:[%s14 + $0x78] sm:$0xff]
      %v1819 = vld [vmem:[%s14 + $0x80] sm:$0x7]
      %v1821 = vsel %vm694, %v1803, 0
      %v1824 = vsel %vm694, %v1804, 0
      %v1827 = vsel %vm694, %v1805, 0
      %v1830 = vsel %vm694, %v1806, 0
      %v1833 = vsel %vm694, %v1807, 0
      %v1836 = vsel %vm694, %v1808, 0
      %v1839 = vsel %vm694, %v1809, 0
      %v1842 = vsel %vm694, %v1810, 0
      %v1845 = vsel %vm694, %v1811, 0
      %v1848 = vsel %vm694, %v1812, 0
      %v1851 = vsel %vm694, %v1813, 0
      %v1854 = vsel %vm694, %v1814, 0
      %v1857 = vsel %vm694, %v1815, 0
      %v1860 = vsel %vm694, %v1816, 0
      %v1863 = vsel %vm694, %v1817, 0
      %v1866 = vsel %vm694, %v1818, 0
      %v1869 = vsel %vm694, %v1819, 0
      %1871 = vmatpush.msra.mxu0 0.0
      %1872 = vmatpush.msra.mxu0 0.0
      %1873 = vmatpush.msra.mxu0 0.0
      %1874 = vmatpush.msra.mxu0 0.0
      %1875 = vmatpush.msra.mxu0 0.0
      %1876 = vmatpush.msra.mxu0 0.0
      %1877 = vmatpush.msra.mxu0 0.0
      %1878 = vmatpush.msra.mxu0 0.0
      %1879 = vmatpush.msra.mxu0 0.0
      %1880 = vmatpush.msra.mxu0 0.0
      %1881 = vmatpush.msra.mxu0 0.0
      %1882 = vmatpush.msra.mxu0 0.0
      %1883 = vmatpush.msra.mxu0 0.0
      %1884 = vmatpush.msra.mxu0 %v733
      %1885 = vmatpush.msra.mxu0 %v608
      %1886 = vmatpush.msra.mxu0 %v607
      %1887 = vmatmul.f32.gmra.mxu0 %v1821
      %v1888 = vpop.f32.mrf.mxu0
      %v1889 = vadd.f32 0.0, %v1888
      %1890 = vmatmul.f32.gmra.mxu0 %v1824
      %v1891 = vpop.f32.mrf.mxu0
      %v1892 = vadd.f32 0.0, %v1891
      %1893 = vmatmul.f32.gmra.mxu0 %v1827
      %v1894 = vpop.f32.mrf.mxu0
      %v1895 = vadd.f32 0.0, %v1894
      %1896 = vmatmul.f32.gmra.mxu0 %v1830
      %v1897 = vpop.f32.mrf.mxu0
      %v1898 = vadd.f32 0.0, %v1897
      %1899 = vmatmul.f32.gmra.mxu0 %v1833
      %v1900 = vpop.f32.mrf.mxu0
      %v1901 = vadd.f32 0.0, %v1900
      %1902 = vmatmul.f32.gmra.mxu0 %v1836
      %v1903 = vpop.f32.mrf.mxu0
      %v1904 = vadd.f32 0.0, %v1903
      %1905 = vmatmul.f32.gmra.mxu0 %v1839
      %v1906 = vpop.f32.mrf.mxu0
      %v1907 = vadd.f32 0.0, %v1906
      %1908 = vmatmul.f32.gmra.mxu0 %v1842
      %v1909 = vpop.f32.mrf.mxu0
      %v1910 = vadd.f32 0.0, %v1909
      %1911 = vmatmul.f32.gmra.mxu0 %v1845
      %v1912 = vpop.f32.mrf.mxu0
      %v1913 = vadd.f32 0.0, %v1912
      %1914 = vmatmul.f32.gmra.mxu0 %v1848
      %v1915 = vpop.f32.mrf.mxu0
      %v1916 = vadd.f32 0.0, %v1915
      %1917 = vmatmul.f32.gmra.mxu0 %v1851
      %v1918 = vpop.f32.mrf.mxu0
      %v1919 = vadd.f32 0.0, %v1918
      %1920 = vmatmul.f32.gmra.mxu0 %v1854
      %v1921 = vpop.f32.mrf.mxu0
      %v1922 = vadd.f32 0.0, %v1921
      %1923 = vmatmul.f32.gmra.mxu0 %v1857
      %v1924 = vpop.f32.mrf.mxu0
      %v1925 = vadd.f32 0.0, %v1924
      %1926 = vmatmul.f32.gmra.mxu0 %v1860
      %v1927 = vpop.f32.mrf.mxu0
      %v1928 = vadd.f32 0.0, %v1927
      %1929 = vmatmul.f32.gmra.mxu0 %v1863
      %v1930 = vpop.f32.mrf.mxu0
      %v1931 = vadd.f32 0.0, %v1930
      %1932 = vmatmul.f32.gmra.mxu0 %v1866
      %v1933 = vpop.f32.mrf.mxu0
      %v1934 = vadd.f32 0.0, %v1933
      %1935 = vmatmul.f32.gmra.mxu0 %v1869
      %v1936 = vpop.f32.mrf.mxu0
      %v1937 = vadd.f32 0.0, %v1936
      %1938 = vdwg.mxu0
      %v1939 = vadd.f32 %v1753, %v1889
      %v1940 = vadd.f32 %v1756, %v1892
      %v1941 = vadd.f32 %v1759, %v1895
      %v1942 = vadd.f32 %v1762, %v1898
      %v1943 = vadd.f32 %v1765, %v1901
      %v1944 = vadd.f32 %v1768, %v1904
      %v1945 = vadd.f32 %v1771, %v1907
      %v1946 = vadd.f32 %v1774, %v1910
      %v1947 = vadd.f32 %v1777, %v1913
      %v1948 = vadd.f32 %v1780, %v1916
      %v1949 = vadd.f32 %v1783, %v1919
      %v1950 = vadd.f32 %v1786, %v1922
      %v1951 = vadd.f32 %v1789, %v1925
      %v1952 = vadd.f32 %v1792, %v1928
      %v1953 = vadd.f32 %v1795, %v1931
      %v1954 = vadd.f32 %v1798, %v1934
      %v1955 = vadd.f32 %v1801, %v1937
      %v1956 = vld [vmem:[%s15] sm:$0xff]
      %v1957 = vld [vmem:[%s15 + $0x8] sm:$0xff]
      %v1958 = vld [vmem:[%s15 + $0x10] sm:$0xff]
      %v1959 = vld [vmem:[%s15 + $0x18] sm:$0xff]
      %v1960 = vld [vmem:[%s15 + $0x20] sm:$0xff]
      %v1961 = vld [vmem:[%s15 + $0x28] sm:$0xff]
      %v1962 = vld [vmem:[%s15 + $0x30] sm:$0xff]
      %v1963 = vld [vmem:[%s15 + $0x38] sm:$0xff]
      %v1964 = vld [vmem:[%s15 + $0x40] sm:$0xff]
      %v1965 = vld [vmem:[%s15 + $0x48] sm:$0xff]
      %v1966 = vld [vmem:[%s15 + $0x50] sm:$0xff]
      %v1967 = vld [vmem:[%s15 + $0x58] sm:$0xff]
      %v1968 = vld [vmem:[%s15 + $0x60] sm:$0xff]
      %v1969 = vld [vmem:[%s15 + $0x68] sm:$0xff]
      %v1970 = vld [vmem:[%s15 + $0x70] sm:$0xff]
      %v1971 = vld [vmem:[%s15 + $0x78] sm:$0xff]
      %v1972 = vld [vmem:[%s15 + $0x80] sm:$0x7]
      %1974 = vset.pattern.permute.xlu0 0
      %1975 = vperm.xlu0 %1974, %v1956
      %v1976 = vpop.permute.xlu0 %1975
      %1979 = vset.pattern.permute.xlu0 0
      %1980 = vperm.xlu0 %1979, %v1957
      %v1981 = vpop.permute.xlu0 %1980
      %1984 = vset.pattern.permute.xlu0 0
      %1985 = vperm.xlu0 %1984, %v1958
      %v1986 = vpop.permute.xlu0 %1985
      %1989 = vset.pattern.permute.xlu0 0
      %1990 = vperm.xlu0 %1989, %v1959
      %v1991 = vpop.permute.xlu0 %1990
      %1994 = vset.pattern.permute.xlu0 0
      %1995 = vperm.xlu0 %1994, %v1960
      %v1996 = vpop.permute.xlu0 %1995
      %1999 = vset.pattern.permute.xlu0 0
      %2000 = vperm.xlu0 %1999, %v1961
      %v2001 = vpop.permute.xlu0 %2000
      %2004 = vset.pattern.permute.xlu0 0
      %2005 = vperm.xlu0 %2004, %v1962
      %v2006 = vpop.permute.xlu0 %2005
      %2009 = vset.pattern.permute.xlu0 0
      %2010 = vperm.xlu0 %2009, %v1963
      %v2011 = vpop.permute.xlu0 %2010
      %2014 = vset.pattern.permute.xlu0 0
      %2015 = vperm.xlu0 %2014, %v1964
      %v2016 = vpop.permute.xlu0 %2015
      %2019 = vset.pattern.permute.xlu0 0
      %2020 = vperm.xlu0 %2019, %v1965
      %v2021 = vpop.permute.xlu0 %2020
      %2024 = vset.pattern.permute.xlu0 0
      %2025 = vperm.xlu0 %2024, %v1966
      %v2026 = vpop.permute.xlu0 %2025
      %2029 = vset.pattern.permute.xlu0 0
      %2030 = vperm.xlu0 %2029, %v1967
      %v2031 = vpop.permute.xlu0 %2030
      %2034 = vset.pattern.permute.xlu0 0
      %2035 = vperm.xlu0 %2034, %v1968
      %v2036 = vpop.permute.xlu0 %2035
      %2039 = vset.pattern.permute.xlu0 0
      %2040 = vperm.xlu0 %2039, %v1969
      %v2041 = vpop.permute.xlu0 %2040
      %2044 = vset.pattern.permute.xlu0 0
      %2045 = vperm.xlu0 %2044, %v1970
      %v2046 = vpop.permute.xlu0 %2045
      %2049 = vset.pattern.permute.xlu0 0
      %2050 = vperm.xlu0 %2049, %v1971
      %v2051 = vpop.permute.xlu0 %2050
      %2054 = vset.pattern.permute.xlu0 0
      %2055 = vperm.xlu0 %2054, %v1972
      %v2056 = vpop.permute.xlu0 %2055
      %v2058 = vadd.f32 %v1939, %v1976
      %v2059 = vadd.f32 %v1940, %v1981
      %v2060 = vadd.f32 %v1941, %v1986
      %v2061 = vadd.f32 %v1942, %v1991
      %v2062 = vadd.f32 %v1943, %v1996
      %v2063 = vadd.f32 %v1944, %v2001
      %v2064 = vadd.f32 %v1945, %v2006
      %v2065 = vadd.f32 %v1946, %v2011
      %v2066 = vadd.f32 %v1947, %v2016
      %v2067 = vadd.f32 %v1948, %v2021
      %v2068 = vadd.f32 %v1949, %v2026
      %v2069 = vadd.f32 %v1950, %v2031
      %v2070 = vadd.f32 %v1951, %v2036
      %v2071 = vadd.f32 %v1952, %v2041
      %v2072 = vadd.f32 %v1953, %v2046
      %v2073 = vadd.f32 %v1954, %v2051
      %v2074 = vadd.f32 %v1955, %v2056
      %v2075 = vmax.f32 %v2058, 0.0
      %v2076 = vmax.f32 %v2059, 0.0
      %v2077 = vmax.f32 %v2060, 0.0
      %v2078 = vmax.f32 %v2061, 0.0
      %v2079 = vmax.f32 %v2062, 0.0
      %v2080 = vmax.f32 %v2063, 0.0
      %v2081 = vmax.f32 %v2064, 0.0
      %v2082 = vmax.f32 %v2065, 0.0
      %v2083 = vmax.f32 %v2066, 0.0
      %v2084 = vmax.f32 %v2067, 0.0
      %v2085 = vmax.f32 %v2068, 0.0
      %v2086 = vmax.f32 %v2069, 0.0
      %v2087 = vmax.f32 %v2070, 0.0
      %v2088 = vmax.f32 %v2071, 0.0
      %v2089 = vmax.f32 %v2072, 0.0
      %v2090 = vmax.f32 %v2073, 0.0
      %v2091 = vmax.f32 %v2074, 0.0
      %v2092 = vld [vmem:[%s16] sm:$0xff]
      %v2093 = vld [vmem:[%s16 + $0x8] sm:$0xff]
      %v2094 = vld [vmem:[%s16 + $0x10] sm:$0xff]
      %v2095 = vld [vmem:[%s16 + $0x18] sm:$0xff]
      %v2096 = vld [vmem:[%s16 + $0x20] sm:$0xff]
      %v2097 = vld [vmem:[%s16 + $0x28] sm:$0xff]
      %v2098 = vld [vmem:[%s16 + $0x30] sm:$0xff]
      %v2099 = vld [vmem:[%s16 + $0x38] sm:$0xff]
      %v2100 = vld [vmem:[%s16 + $0x40] sm:$0xff]
      %v2101 = vld [vmem:[%s16 + $0x48] sm:$0xff]
      %v2102 = vld [vmem:[%s16 + $0x50] sm:$0xff]
      %v2103 = vld [vmem:[%s16 + $0x58] sm:$0xff]
      %v2104 = vld [vmem:[%s16 + $0x60] sm:$0xff]
      %v2105 = vld [vmem:[%s16 + $0x68] sm:$0xff]
      %v2106 = vld [vmem:[%s16 + $0x70] sm:$0xff]
      %v2107 = vld [vmem:[%s16 + $0x78] sm:$0xff]
      %v2108 = vld [vmem:[%s16 + $0x80] sm:$0xff]
      %v2109 = vld [vmem:[%s16 + $0x88] sm:$0xff]
      %v2110 = vld [vmem:[%s16 + $0x90] sm:$0xff]
      %v2111 = vld [vmem:[%s16 + $0x98] sm:$0xff]
      %v2112 = vld [vmem:[%s16 + $0xa0] sm:$0xff]
      %v2113 = vld [vmem:[%s16 + $0xa8] sm:$0xff]
      %v2114 = vld [vmem:[%s16 + $0xb0] sm:$0xff]
      %v2115 = vld [vmem:[%s16 + $0xb8] sm:$0xff]
      %v2116 = vld [vmem:[%s16 + $0xc0] sm:$0xff]
      %v2117 = vld [vmem:[%s16 + $0xc8] sm:$0xff]
      %v2118 = vld [vmem:[%s16 + $0xd0] sm:$0xff]
      %v2119 = vld [vmem:[%s16 + $0xd8] sm:$0xff]
      %v2120 = vld [vmem:[%s16 + $0xe0] sm:$0xff]
      %v2121 = vld [vmem:[%s16 + $0xe8] sm:$0xff]
      %v2122 = vld [vmem:[%s16 + $0xf0] sm:$0xff]
      %v2123 = vld [vmem:[%s16 + $0xf8] sm:$0xff]
      %v2124 = vld [vmem:[%s16 + $0x100] sm:$0x7]
      %v2125 = vld [vmem:[%s16 + $0x108] sm:$0x7]
      %v2126 = vld [vmem:[%s17] sm:$0xff]
      %v2127 = vld [vmem:[%s17 + $0x8] sm:$0xff]
      %v2128 = vld [vmem:[%s17 + $0x10] sm:$0xff]
      %v2129 = vld [vmem:[%s17 + $0x18] sm:$0xff]
      %v2130 = vld [vmem:[%s17 + $0x20] sm:$0xff]
      %v2131 = vld [vmem:[%s17 + $0x28] sm:$0xff]
      %v2132 = vld [vmem:[%s17 + $0x30] sm:$0xff]
      %v2133 = vld [vmem:[%s17 + $0x38] sm:$0xff]
      %v2134 = vld [vmem:[%s17 + $0x40] sm:$0xff]
      %v2135 = vld [vmem:[%s17 + $0x48] sm:$0xff]
      %v2136 = vld [vmem:[%s17 + $0x50] sm:$0xff]
      %v2137 = vld [vmem:[%s17 + $0x58] sm:$0xff]
      %v2138 = vld [vmem:[%s17 + $0x60] sm:$0xff]
      %v2139 = vld [vmem:[%s17 + $0x68] sm:$0xff]
      %v2140 = vld [vmem:[%s17 + $0x70] sm:$0xff]
      %v2141 = vld [vmem:[%s17 + $0x78] sm:$0xff]
      %v2142 = vld [vmem:[%s17 + $0x80] sm:$0x7]
      %2144 = vset.pattern.permute.xlu0 0
      %2145 = vperm.xlu0 %2144, %v2126
      %v2146 = vpop.permute.xlu0 %2145
      %2149 = vset.pattern.permute.xlu0 0
      %2150 = vperm.xlu0 %2149, %v2127
      %v2151 = vpop.permute.xlu0 %2150
      %2154 = vset.pattern.permute.xlu0 0
      %2155 = vperm.xlu0 %2154, %v2128
      %v2156 = vpop.permute.xlu0 %2155
      %2159 = vset.pattern.permute.xlu0 0
      %2160 = vperm.xlu0 %2159, %v2129
      %v2161 = vpop.permute.xlu0 %2160
      %2164 = vset.pattern.permute.xlu0 0
      %2165 = vperm.xlu0 %2164, %v2130
      %v2166 = vpop.permute.xlu0 %2165
      %2169 = vset.pattern.permute.xlu0 0
      %2170 = vperm.xlu0 %2169, %v2131
      %v2171 = vpop.permute.xlu0 %2170
      %2174 = vset.pattern.permute.xlu0 0
      %2175 = vperm.xlu0 %2174, %v2132
      %v2176 = vpop.permute.xlu0 %2175
      %2179 = vset.pattern.permute.xlu0 0
      %2180 = vperm.xlu0 %2179, %v2133
      %v2181 = vpop.permute.xlu0 %2180
      %2184 = vset.pattern.permute.xlu0 0
      %2185 = vperm.xlu0 %2184, %v2134
      %v2186 = vpop.permute.xlu0 %2185
      %2189 = vset.pattern.permute.xlu0 0
      %2190 = vperm.xlu0 %2189, %v2135
      %v2191 = vpop.permute.xlu0 %2190
      %2194 = vset.pattern.permute.xlu0 0
      %2195 = vperm.xlu0 %2194, %v2136
      %v2196 = vpop.permute.xlu0 %2195
      %2199 = vset.pattern.permute.xlu0 0
      %2200 = vperm.xlu0 %2199, %v2137
      %v2201 = vpop.permute.xlu0 %2200
      %2204 = vset.pattern.permute.xlu0 0
      %2205 = vperm.xlu0 %2204, %v2138
      %v2206 = vpop.permute.xlu0 %2205
      %2209 = vset.pattern.permute.xlu0 0
      %2210 = vperm.xlu0 %2209, %v2139
      %v2211 = vpop.permute.xlu0 %2210
      %2214 = vset.pattern.permute.xlu0 0
      %2215 = vperm.xlu0 %2214, %v2140
      %v2216 = vpop.permute.xlu0 %2215
      %2219 = vset.pattern.permute.xlu0 0
      %2220 = vperm.xlu0 %2219, %v2141
      %v2221 = vpop.permute.xlu0 %2220
      %2224 = vset.pattern.permute.xlu0 0
      %2225 = vperm.xlu0 %2224, %v2142
      %v2226 = vpop.permute.xlu0 %2225
      %vm2228 = vcmask 23552
      %v2230 = vsel %vm2228, %v2093, 0
      %v2233 = vsel %vm2228, %v2095, 0
      %v2236 = vsel %vm2228, %v2097, 0
      %v2239 = vsel %vm2228, %v2099, 0
      %v2242 = vsel %vm2228, %v2101, 0
      %v2245 = vsel %vm2228, %v2103, 0
      %v2248 = vsel %vm2228, %v2105, 0
      %v2251 = vsel %vm2228, %v2107, 0
      %v2254 = vsel %vm2228, %v2109, 0
      %v2257 = vsel %vm2228, %v2111, 0
      %v2260 = vsel %vm2228, %v2113, 0
      %v2263 = vsel %vm2228, %v2115, 0
      %v2266 = vsel %vm2228, %v2117, 0
      %v2269 = vsel %vm2228, %v2119, 0
      %v2272 = vsel %vm2228, %v2121, 0
      %v2275 = vsel %vm2228, %v2123, 0
      %v2278 = vsel %vm2228, %v2125, 0
      %vm2280 = vcmask 1042432
      %v2282 = vsel %vm2280, %v2091, 0
      %2284 = vmatpush.msra.mxu0 %v2090
      %2285 = vmatpush.msra.mxu0 %v2089
      %2286 = vmatpush.msra.mxu0 %v2088
      %2287 = vmatpush.msra.mxu0 %v2087
      %2288 = vmatpush.msra.mxu0 %v2086
      %2289 = vmatpush.msra.mxu0 %v2085
      %2290 = vmatpush.msra.mxu0 %v2084
      %2291 = vmatpush.msra.mxu0 %v2083
      %2292 = vmatpush.msra.mxu0 %v2082
      %2293 = vmatpush.msra.mxu0 %v2081
      %2294 = vmatpush.msra.mxu0 %v2080
      %2295 = vmatpush.msra.mxu0 %v2079
      %2296 = vmatpush.msra.mxu0 %v2078
      %2297 = vmatpush.msra.mxu0 %v2077
      %2298 = vmatpush.msra.mxu0 %v2076
      %2299 = vmatpush.msra.mxu0 %v2075
      %2300 = vmatmul.f32.gmra.mxu0 %v2092
      %v2301 = vpop.f32.mrf.mxu0
      %v2302 = vadd.f32 %v2146, %v2301
      %2303 = vmatmul.f32.gmra.mxu0 %v2094
      %v2304 = vpop.f32.mrf.mxu0
      %v2305 = vadd.f32 %v2151, %v2304
      %2306 = vmatmul.f32.gmra.mxu0 %v2096
      %v2307 = vpop.f32.mrf.mxu0
      %v2308 = vadd.f32 %v2156, %v2307
      %2309 = vmatmul.f32.gmra.mxu0 %v2098
      %v2310 = vpop.f32.mrf.mxu0
      %v2311 = vadd.f32 %v2161, %v2310
      %2312 = vmatmul.f32.gmra.mxu0 %v2100
      %v2313 = vpop.f32.mrf.mxu0
      %v2314 = vadd.f32 %v2166, %v2313
      %2315 = vmatmul.f32.gmra.mxu0 %v2102
      %v2316 = vpop.f32.mrf.mxu0
      %v2317 = vadd.f32 %v2171, %v2316
      %2318 = vmatmul.f32.gmra.mxu0 %v2104
      %v2319 = vpop.f32.mrf.mxu0
      %v2320 = vadd.f32 %v2176, %v2319
      %2321 = vmatmul.f32.gmra.mxu0 %v2106
      %v2322 = vpop.f32.mrf.mxu0
      %v2323 = vadd.f32 %v2181, %v2322
      %2324 = vmatmul.f32.gmra.mxu0 %v2108
      %v2325 = vpop.f32.mrf.mxu0
      %v2326 = vadd.f32 %v2186, %v2325
      %2327 = vmatmul.f32.gmra.mxu0 %v2110
      %v2328 = vpop.f32.mrf.mxu0
      %v2329 = vadd.f32 %v2191, %v2328
      %2330 = vmatmul.f32.gmra.mxu0 %v2112
      %v2331 = vpop.f32.mrf.mxu0
      %v2332 = vadd.f32 %v2196, %v2331
      %2333 = vmatmul.f32.gmra.mxu0 %v2114
      %v2334 = vpop.f32.mrf.mxu0
      %v2335 = vadd.f32 %v2201, %v2334
      %2336 = vmatmul.f32.gmra.mxu0 %v2116
      %v2337 = vpop.f32.mrf.mxu0
      %v2338 = vadd.f32 %v2206, %v2337
      %2339 = vmatmul.f32.gmra.mxu0 %v2118
      %v2340 = vpop.f32.mrf.mxu0
      %v2341 = vadd.f32 %v2211, %v2340
      %2342 = vmatmul.f32.gmra.mxu0 %v2120
      %v2343 = vpop.f32.mrf.mxu0
      %v2344 = vadd.f32 %v2216, %v2343
      %2345 = vmatmul.f32.gmra.mxu0 %v2122
      %v2346 = vpop.f32.mrf.mxu0
      %v2347 = vadd.f32 %v2221, %v2346
      %2348 = vmatmul.f32.gmra.mxu0 %v2124
      %v2349 = vpop.f32.mrf.mxu0
      %v2350 = vadd.f32 %v2226, %v2349
      %2351 = vdwg.mxu0
      %2352 = vmatpush.msra.mxu0 0.0
      %2353 = vmatpush.msra.mxu0 0.0
      %2354 = vmatpush.msra.mxu0 0.0
      %2355 = vmatpush.msra.mxu0 0.0
      %2356 = vmatpush.msra.mxu0 0.0
      %2357 = vmatpush.msra.mxu0 0.0
      %2358 = vmatpush.msra.mxu0 0.0
      %2359 = vmatpush.msra.mxu0 0.0
      %2360 = vmatpush.msra.mxu0 0.0
      %2361 = vmatpush.msra.mxu0 0.0
      %2362 = vmatpush.msra.mxu0 0.0
      %2363 = vmatpush.msra.mxu0 0.0
      %2364 = vmatpush.msra.mxu0 0.0
      %2365 = vmatpush.msra.mxu0 0.0
      %2366 = vmatpush.msra.mxu0 0.0
      %2367 = vmatpush.msra.mxu0 %v2282
      %2368 = vmatmul.f32.gmra.mxu0 %v2230
      %v2369 = vpop.f32.mrf.mxu0
      %v2370 = vadd.f32 %v2302, %v2369
      %2371 = vmatmul.f32.gmra.mxu0 %v2233
      %v2372 = vpop.f32.mrf.mxu0
      %v2373 = vadd.f32 %v2305, %v2372
      %2374 = vmatmul.f32.gmra.mxu0 %v2236
      %v2375 = vpop.f32.mrf.mxu0
      %v2376 = vadd.f32 %v2308, %v2375
      %2377 = vmatmul.f32.gmra.mxu0 %v2239
      %v2378 = vpop.f32.mrf.mxu0
      %v2379 = vadd.f32 %v2311, %v2378
      %2380 = vmatmul.f32.gmra.mxu0 %v2242
      %v2381 = vpop.f32.mrf.mxu0
      %v2382 = vadd.f32 %v2314, %v2381
      %2383 = vmatmul.f32.gmra.mxu0 %v2245
      %v2384 = vpop.f32.mrf.mxu0
      %v2385 = vadd.f32 %v2317, %v2384
      %2386 = vmatmul.f32.gmra.mxu0 %v2248
      %v2387 = vpop.f32.mrf.mxu0
      %v2388 = vadd.f32 %v2320, %v2387
      %2389 = vmatmul.f32.gmra.mxu0 %v2251
      %v2390 = vpop.f32.mrf.mxu0
      %v2391 = vadd.f32 %v2323, %v2390
      %2392 = vmatmul.f32.gmra.mxu0 %v2254
      %v2393 = vpop.f32.mrf.mxu0
      %v2394 = vadd.f32 %v2326, %v2393
      %2395 = vmatmul.f32.gmra.mxu0 %v2257
      %v2396 = vpop.f32.mrf.mxu0
      %v2397 = vadd.f32 %v2329, %v2396
      %2398 = vmatmul.f32.gmra.mxu0 %v2260
      %v2399 = vpop.f32.mrf.mxu0
      %v2400 = vadd.f32 %v2332, %v2399
      %2401 = vmatmul.f32.gmra.mxu0 %v2263
      %v2402 = vpop.f32.mrf.mxu0
      %v2403 = vadd.f32 %v2335, %v2402
      %2404 = vmatmul.f32.gmra.mxu0 %v2266
      %v2405 = vpop.f32.mrf.mxu0
      %v2406 = vadd.f32 %v2338, %v2405
      %2407 = vmatmul.f32.gmra.mxu0 %v2269
      %v2408 = vpop.f32.mrf.mxu0
      %v2409 = vadd.f32 %v2341, %v2408
      %2410 = vmatmul.f32.gmra.mxu0 %v2272
      %v2411 = vpop.f32.mrf.mxu0
      %v2412 = vadd.f32 %v2344, %v2411
      %2413 = vmatmul.f32.gmra.mxu0 %v2275
      %v2414 = vpop.f32.mrf.mxu0
      %v2415 = vadd.f32 %v2347, %v2414
      %2416 = vmatmul.f32.gmra.mxu0 %v2278
      %v2417 = vpop.f32.mrf.mxu0
      %v2418 = vadd.f32 %v2350, %v2417
      %2419 = vdwg.mxu0
      %v2420 = vmax.f32 %v2370, 0.0
      %v2421 = vmax.f32 %v2373, 0.0
      %v2422 = vmax.f32 %v2376, 0.0
      %v2423 = vmax.f32 %v2379, 0.0
      %v2424 = vmax.f32 %v2382, 0.0
      %v2425 = vmax.f32 %v2385, 0.0
      %v2426 = vmax.f32 %v2388, 0.0
      %v2427 = vmax.f32 %v2391, 0.0
      %v2428 = vmax.f32 %v2394, 0.0
      %v2429 = vmax.f32 %v2397, 0.0
      %v2430 = vmax.f32 %v2400, 0.0
      %v2431 = vmax.f32 %v2403, 0.0
      %v2432 = vmax.f32 %v2406, 0.0
      %v2433 = vmax.f32 %v2409, 0.0
      %v2434 = vmax.f32 %v2412, 0.0
      %v2435 = vmax.f32 %v2415, 0.0
      %v2436 = vmax.f32 %v2418, 0.0
      %2437 = vst [vmem:[%s606] sm:$0xff] %v2420
      %2438 = vst [vmem:[%s606 + $0x8] sm:$0xff] %v2421
      %2439 = vst [vmem:[%s606 + $0x10] sm:$0xff] %v2422
      %2440 = vst [vmem:[%s606 + $0x18] sm:$0xff] %v2423
      %2441 = vst [vmem:[%s606 + $0x20] sm:$0xff] %v2424
      %2442 = vst [vmem:[%s606 + $0x28] sm:$0xff] %v2425
      %2443 = vst [vmem:[%s606 + $0x30] sm:$0xff] %v2426
      %2444 = vst [vmem:[%s606 + $0x38] sm:$0xff] %v2427
      %2445 = vst [vmem:[%s606 + $0x40] sm:$0xff] %v2428
      %2446 = vst [vmem:[%s606 + $0x48] sm:$0xff] %v2429
      %2447 = vst [vmem:[%s606 + $0x50] sm:$0xff] %v2430
      %2448 = vst [vmem:[%s606 + $0x58] sm:$0xff] %v2431
      %2449 = vst [vmem:[%s606 + $0x60] sm:$0xff] %v2432
      %2450 = vst [vmem:[%s606 + $0x68] sm:$0xff] %v2433
      %2451 = vst [vmem:[%s606 + $0x70] sm:$0xff] %v2434
      %2452 = vst [vmem:[%s606 + $0x78] sm:$0xff] %v2435
      %2453 = vst [vmem:[%s606 + $0x80] sm:$0x7] %v2436
      %p2454 = scmp.lt.s32.totalorder %s33, 1
      %s2455 = scalar_select %p2454, %s33, 1
      %p2456 = scmp.lt.s32.totalorder %s34, 0
      %s2457 = scalar_select %p2456, %s34, 0
      %s2458 = smul.addr %s2455, 17
      %s2459 = sadd.s32 %s2457, %s2458
      %s2460 = smul.addr %s2459, 8
      %s2461 = scalar_lea.vmem %s18, %s2460
      // Predicated region
      $region93: #{tpu_custom_call.1} parent=91 // pred_check
        %p2462 = pneg %p446
      $region94: #{tpu_custom_call.1} parent=91 // pred_check_branch
        %2464 = sbr.rel (%p2462) target = $region96
      $region95: #{tpu_custom_call.1} parent=91 // pred_region
        _
      $region96: #{tpu_custom_call.1} parent=91 // pred_fallthru
        _
    $region92: #{tpu_custom_call.1} parent=5 // pred_fallthru
      _
    %p2465 = scmp.le.s32.totalorder 2, %s24
    // Predicated region
    $region97: #{tpu_custom_call.1} parent=5 // pred_check
      %p2466 = pneg %p2465
    $region98: #{tpu_custom_call.1} parent=5 // pred_check_branch
      %2468 = sbr.rel (%p2466) target = $region100
    $region99: #{tpu_custom_call.1} parent=5 // pred_region
      %s2469 = ssub.s32 %s24, 2
      // Predicated region
      $region101: #{tpu_custom_call.1} parent=99 // pred_check
        %p2470 = pneg %p452
      $region102: #{tpu_custom_call.1} parent=99 // pred_check_branch
        %2472 = sbr.rel (%p2470) target = $region104
      $region103: #{tpu_custom_call.1} parent=99 // pred_region
        %p2473 = scmp.lt.s32.totalorder %s35, 1
        %s2474 = scalar_select %p2473, %s35, 1
        %p2475 = scmp.lt.s32.totalorder %s36, 0
        %s2476 = scalar_select %p2475, %s36, 0
        %s2477 = smul.addr %s2474, 17
        %s2478 = sadd.s32 %s2476, %s2477
        %s2479 = smul.addr %s2478, 8
        %s2480 = scalar_lea.vmem %s18, %s2479
      $region104: #{tpu_custom_call.1} parent=99 // pred_fallthru
        _
    $region100: #{tpu_custom_call.1} parent=5 // pred_fallthru
      _
  $region6: #{tpu_custom_call.1} parent=0 // loop_footer
    %s28 = sadd.s32 1, %s24
  $region7: #{tpu_custom_call.1} parent=0 // loop_footer_branch
    %23 = sbr.rel target = $region3
  $region8: #{tpu_custom_call.1} parent=0 // loop_exit
    _

</llo_original>
